<compile_context>
chip_gen: v5e
topology: v5e:2x2
jax: 0.10.0
libtpu: 0.0.40
codegen_flags: <defaults>
</compile_context>

<pallas_src>
import functools

import jax
import jax.numpy as jnp
from jax.experimental import pallas as pl
from jax.experimental.pallas import tpu as pltpu

NUM_GROUPS = 32
EPS = 1e-6


def _vmem_limit_bytes():
    # Explicit scoped-VMEM limit (default is 16/32 MiB); leave headroom for
    # the Pallas double buffers of the x / output blocks.
    try:
        cap = pltpu.get_tpu_info().vmem_capacity_bytes
        return int(cap * 3 // 4)
    except Exception:
        return 64 * 1024 * 1024


def _use_bf16_exp():
    # bf16 EUP (exp) path exists on v6e / v7x; keep f32 on v5e and older.
    try:
        kind = jax.devices()[0].device_kind.lower()
        return not any(t in kind for t in ("v2", "v3", "v4", "v5"))
    except Exception:
        return False


def _choose_tq(hw, pref):
    if hw <= pref:
        return hw
    for t in range(min(pref, hw), 7, -1):
        if hw % t == 0 and t % 8 == 0:
            return t
    return hw


# ----------------------------------------------------------------------------
# Fused kernel: GroupNorm + QKV (once per batch element, qi == 0) into VMEM
# scratch, then exact-softmax attention + proj_out + residual per query tile.
# grid = (B, num_q_tiles)
# ----------------------------------------------------------------------------
def fused_attn_kernel(x_ref, gamma_ref, beta_ref, gmat_ref, gmat_t_ref,
                      wqkv_ref, bqkv_ref, wp_ref, bp_ref, o_ref,
                      q_sc, k_sc, v_sc, *, bf16_exp):
    qi = pl.program_id(1)
    hw, c = x_ref.shape
    tq = o_ref.shape[0]

    # ---- phase 1 (first q tile of this batch element): GroupNorm + fused QKV ----
    @pl.when(qi == 0)
    def _():
        x = x_ref[...].astype(jnp.float32)                    # (HW, C)
        cpg = c // NUM_GROUPS
        n = float(hw * cpg)                                   # elems per (batch, group)

        gmat = gmat_ref[...]                                  # (C, G) group membership
        gmat_t = gmat_t_ref[...]                              # (G, C)

        # One-pass GroupNorm(32, eps=1e-6): per-channel sum / sum-of-squares,
        # reduced to per-group stats via the membership matmuls.
        s1 = jnp.sum(x, axis=0, keepdims=True)                # (1, C)
        s2 = jnp.sum(x * x, axis=0, keepdims=True)            # (1, C)
        mean_g = jnp.dot(s1, gmat, preferred_element_type=jnp.float32) / n   # (1, G)
        ex2_g = jnp.dot(s2, gmat, preferred_element_type=jnp.float32) / n    # (1, G)
        var_g = ex2_g - mean_g * mean_g
        mean_c = jnp.dot(mean_g, gmat_t, preferred_element_type=jnp.float32)  # (1, C)
        var_c = jnp.dot(var_g, gmat_t, preferred_element_type=jnp.float32)    # (1, C)
        xn = (x - mean_c) * jax.lax.rsqrt(var_c + EPS)
        xn = xn * gamma_ref[...] + beta_ref[...]

        # Fused q/k/v projection: one (HW, C) x (C, 3C) bf16 matmul, f32 acc.
        qkv = jnp.dot(xn.astype(jnp.bfloat16), wqkv_ref[...],
                      preferred_element_type=jnp.float32) + bqkv_ref[...]      # (HW, 3C)
        q_sc[...] = qkv[:, :c].astype(jnp.bfloat16)           # softmax scale pre-folded
        k_sc[...] = qkv[:, c:2 * c].astype(jnp.bfloat16)
        v_sc[...] = qkv[:, 2 * c:].astype(jnp.bfloat16)

    # ---- phase 2: exact softmax attention for this query tile ----
    start = pl.multiple_of(qi * tq, tq)
    q = q_sc[pl.ds(start, tq), :]                             # (TQ, C) bf16

    # QK^T: contract the C axes directly (canonical NT form, no k.T copy).
    # TODO(synk): if profiling shows a per-tile vxpose here, emit k pre-transposed
    # as (C, HW) from phase 1 instead.
    s = jax.lax.dot_general(q, k_sc[...], (((1,), (1,)), ((), ())),
                            preferred_element_type=jnp.float32)                # (TQ, HW)

    m = jnp.max(s, axis=-1, keepdims=True)
    if bf16_exp:
        p_mx = jnp.exp((s - m).astype(jnp.bfloat16))          # bf16 EUP path
        denom = jnp.sum(p_mx.astype(jnp.float32), axis=-1, keepdims=True)
    else:
        p = jnp.exp(s - m)
        denom = jnp.sum(p, axis=-1, keepdims=True)
        p_mx = p.astype(jnp.bfloat16)

    attn = jnp.dot(p_mx, v_sc[...], preferred_element_type=jnp.float32)        # (TQ, C)
    attn = attn * pl.reciprocal(denom, approx=False)          # exact, once per tile

    proj = jnp.dot(attn.astype(jnp.bfloat16), wp_ref[...],
                   preferred_element_type=jnp.float32) + bp_ref[...]
    xres = x_ref[pl.ds(start, tq), :].astype(jnp.float32)
    o_ref[...] = (xres + proj).astype(o_ref.dtype)


# ----------------------------------------------------------------------------
# Wrapper
# ----------------------------------------------------------------------------
def attn_block(x_nchw, params, *, tq=256):
    B, C, H, W = x_nchw.shape
    assert C % NUM_GROUPS == 0, "GroupNorm(32) requires C % 32 == 0"
    HW = H * W
    x = jnp.transpose(x_nchw, (0, 2, 3, 1)).reshape(B, HW, C)

    tq = _choose_tq(HW, tq)
    nq = HW // tq

    # Group-membership matrices (avoid in-kernel reshapes for group reductions).
    cpg = C // NUM_GROUPS
    group_idx = jnp.arange(C) // cpg
    gmat = (group_idx[:, None] == jnp.arange(NUM_GROUPS)[None, :]).astype(jnp.float32)
    gmat_t = gmat.T

    # Conv weights are (Cout, Cin); pre-transpose to (Cin, Cout), fuse QKV,
    # fold the 1/sqrt(C) softmax scale into Wq/bq, cast MXU weights to bf16.
    scale = float(C) ** -0.5
    wqkv = jnp.concatenate(
        [params["wq"].T * scale, params["wk"].T, params["wv"].T],
        axis=1).astype(jnp.bfloat16)                                       # (C, 3C)
    bqkv = jnp.concatenate(
        [params["bq"] * scale, params["bk"], params["bv"]]
    ).reshape(1, 3 * C).astype(jnp.float32)
    wp = params["wp"].T.astype(jnp.bfloat16)                               # (C, C)
    bp = params["bp"].reshape(1, C).astype(jnp.float32)
    gamma = params["gamma"].reshape(1, C).astype(jnp.float32)
    beta = params["beta"].reshape(1, C).astype(jnp.float32)

    kernel = functools.partial(fused_attn_kernel, bf16_exp=_use_bf16_exp())

    out = pl.pallas_call(
        kernel,
        out_shape=jax.ShapeDtypeStruct((B, HW, C), x.dtype),
        grid_spec=pltpu.PrefetchScalarGridSpec(
            num_scalar_prefetch=0,
            grid=(B, nq),
            in_specs=[
                pl.BlockSpec((None, HW, C), lambda b, qi: (b, 0, 0)),      # x (whole batch elem)
                pl.BlockSpec((1, C), lambda b, qi: (0, 0)),                # gamma
                pl.BlockSpec((1, C), lambda b, qi: (0, 0)),                # beta
                pl.BlockSpec((C, NUM_GROUPS), lambda b, qi: (0, 0)),       # gmat
                pl.BlockSpec((NUM_GROUPS, C), lambda b, qi: (0, 0)),       # gmat.T
                pl.BlockSpec((C, 3 * C), lambda b, qi: (0, 0)),            # wqkv
                pl.BlockSpec((1, 3 * C), lambda b, qi: (0, 0)),            # bqkv
                pl.BlockSpec((C, C), lambda b, qi: (0, 0)),                # wp
                pl.BlockSpec((1, C), lambda b, qi: (0, 0)),                # bp
            ],
            out_specs=pl.BlockSpec((None, tq, C), lambda b, qi: (b, qi, 0)),
            scratch_shapes=[
                pltpu.VMEM((HW, C), jnp.bfloat16),   # q (pre-scaled), batch-resident
                pltpu.VMEM((HW, C), jnp.bfloat16),   # k, batch-resident
                pltpu.VMEM((HW, C), jnp.bfloat16),   # v, batch-resident
            ],
        ),
        compiler_params=pltpu.CompilerParams(
            dimension_semantics=("parallel", "arbitrary"),
            vmem_limit_bytes=_vmem_limit_bytes()),
    )(x, gamma, beta, gmat, gmat_t, wqkv, bqkv, wp, bp)

    return jnp.transpose(out.reshape(B, H, W, C), (0, 3, 1, 2))


# ----------------------------------------------------------------------------
# Params + pure-JAX reference (mirrors the PyTorch forward exactly, f32)
# ----------------------------------------------------------------------------
def init_params(key, C):
    ks = jax.random.split(key, 10)

    def conv_w(k):
        return jax.random.normal(k, (C, C), jnp.float32) / jnp.sqrt(jnp.float32(C))

    def conv_b(k):
        return 0.1 * jax.random.normal(k, (C,), jnp.float32)

    return dict(
        gamma=1.0 + 0.1 * jax.random.normal(ks[0], (C,), jnp.float32),
        beta=0.1 * jax.random.normal(ks[1], (C,), jnp.float32),
        wq=conv_w(ks[2]), bq=conv_b(ks[3]),
        wk=conv_w(ks[4]), bk=conv_b(ks[5]),
        wv=conv_w(ks[6]), bv=conv_b(ks[7]),
        wp=conv_w(ks[8]), bp=conv_b(ks[9]),
    )


def ref_attn_block(x_nchw, p):
    B, C, H, W = x_nchw.shape
    x = x_nchw.astype(jnp.float32)
    xg = x.reshape(B, NUM_GROUPS, C // NUM_GROUPS, H, W)
    mean = xg.mean(axis=(2, 3, 4), keepdims=True)
    var = ((xg - mean) ** 2).mean(axis=(2, 3, 4), keepdims=True)
    xn = ((xg - mean) / jnp.sqrt(var + EPS)).reshape(B, C, H, W)
    xn = xn * p["gamma"][None, :, None, None] + p["beta"][None, :, None, None]

    def conv1x1(z, w, b):
        return jnp.einsum("bchw,oc->bohw", z, w) + b[None, :, None, None]

    q = conv1x1(xn, p["wq"], p["bq"])
    k = conv1x1(xn, p["wk"], p["bk"])
    v = conv1x1(xn, p["wv"], p["bv"])
    HW = H * W
    qf = q.reshape(B, C, HW).transpose(0, 2, 1)
    kf = k.reshape(B, C, HW)
    attn = jnp.einsum("bqc,bck->bqk", qf, kf) * (int(C) ** -0.5)
    attn = jax.nn.softmax(attn, axis=2)
    vf = v.reshape(B, C, HW)
    out = jnp.einsum("bck,bqk->bcq", vf, attn).reshape(B, C, H, W)
    out = conv1x1(out, p["wp"], p["bp"])
    return x_nchw + out


if __name__ == "__main__":
    key = jax.random.PRNGKey(0)
    kx, kp = jax.random.split(key)

    # GroupNorm(32) requires C % 32 == 0; C=128 keeps everything lane-dense.
    B, C, H, W = 2, 128, 8, 8
    x = jax.random.normal(kx, (B, C, H, W), jnp.float32)
    params = init_params(kp, C)

    y = jax.block_until_ready(attn_block(x, params))
    y_ref = ref_attn_block(x, params)

    assert y.shape == (B, C, H, W)
    # bf16 MXU operands (with f32 accumulation) -> bf16-level tolerance vs f32 ref.
    err = float(jnp.max(jnp.abs(y - y_ref)))
    assert jnp.allclose(y, y_ref, rtol=5e-2, atol=5e-2), err

    print("KERNEL_OK")
</pallas_src>

<mosaic_0001>
module attributes {stable_mosaic.version = 11 : i64} {
  func.func @fused_attn_kernel(%arg0: i32, %arg1: i32, %arg2: memref<1x64x128xf32, #tpu.memory_space<vmem>>, %arg3: memref<1x128xf32, #tpu.memory_space<vmem>>, %arg4: memref<1x128xf32, #tpu.memory_space<vmem>>, %arg5: memref<128x32xf32, #tpu.memory_space<vmem>>, %arg6: memref<32x128xf32, #tpu.memory_space<vmem>>, %arg7: memref<128x384xbf16, #tpu.memory_space<vmem>>, %arg8: memref<1x384xf32, #tpu.memory_space<vmem>>, %arg9: memref<128x128xbf16, #tpu.memory_space<vmem>>, %arg10: memref<1x128xf32, #tpu.memory_space<vmem>>, %arg11: memref<1x64x128xf32, #tpu.memory_space<vmem>>, %arg12: memref<64x128xbf16, #tpu.memory_space<vmem>>, %arg13: memref<64x128xbf16, #tpu.memory_space<vmem>>, %arg14: memref<64x128xbf16, #tpu.memory_space<vmem>>) attributes {dimension_semantics = [#tpu.dimension_semantics<parallel>, #tpu.dimension_semantics<arbitrary>], iteration_bounds = array<i64: 2, 1>, scalar_prefetch = 0 : i64, scratch_operands = 3 : i64, tpu.core_type = #tpu.core_type<tc>, window_params = [{transform_indices = @transform_0, window_bounds = array<i64: 1, 64, 128>}, {pipeline_mode = #tpu.pipeline_mode<synchronous>, transform_indices = @transform_1, window_bounds = array<i64: 1, 128>}, {pipeline_mode = #tpu.pipeline_mode<synchronous>, transform_indices = @transform_2, window_bounds = array<i64: 1, 128>}, {pipeline_mode = #tpu.pipeline_mode<synchronous>, transform_indices = @transform_3, window_bounds = array<i64: 128, 32>}, {pipeline_mode = #tpu.pipeline_mode<synchronous>, transform_indices = @transform_4, window_bounds = array<i64: 32, 128>}, {pipeline_mode = #tpu.pipeline_mode<synchronous>, transform_indices = @transform_5, window_bounds = array<i64: 128, 384>}, {pipeline_mode = #tpu.pipeline_mode<synchronous>, transform_indices = @transform_6, window_bounds = array<i64: 1, 384>}, {pipeline_mode = #tpu.pipeline_mode<synchronous>, transform_indices = @transform_7, window_bounds = array<i64: 128, 128>}, {pipeline_mode = #tpu.pipeline_mode<synchronous>, transform_indices = @transform_8, window_bounds = array<i64: 1, 128>}, {transform_indices = @transform_9, window_bounds = array<i64: 1, 64, 128>}]} {
    %c0_i32 = arith.constant 0 : i32
    %0 = arith.cmpi eq, %arg1, %c0_i32 : i32
    %1 = arith.extui %0 : i1 to i32
    %c0_i32_0 = arith.constant 0 : i32
    %2 = arith.cmpi ne, %1, %c0_i32_0 : i32
    scf.if %2 {
      %c0_18 = arith.constant 0 : index
      %c0_19 = arith.constant 0 : index
      %c0_20 = arith.constant 0 : index
      %36 = vector.load %arg2[%c0_18, %c0_19, %c0_20] : memref<1x64x128xf32, #tpu.memory_space<vmem>>, vector<1x64x128xf32>
      %37 = vector.shape_cast %36 : vector<1x64x128xf32> to vector<64x128xf32>
      %c0_21 = arith.constant 0 : index
      %c0_22 = arith.constant 0 : index
      %38 = vector.load %arg5[%c0_21, %c0_22] : memref<128x32xf32, #tpu.memory_space<vmem>>, vector<128x32xf32>
      %c0_23 = arith.constant 0 : index
      %c0_24 = arith.constant 0 : index
      %39 = vector.load %arg6[%c0_23, %c0_24] : memref<32x128xf32, #tpu.memory_space<vmem>>, vector<32x128xf32>
      %cst_25 = arith.constant dense<0.000000e+00> : vector<128xf32>
      %40 = vector.multi_reduction <add>, %37, %cst_25 [0] : vector<64x128xf32> to vector<128xf32>
      %41 = vector.shape_cast %40 : vector<128xf32> to vector<1x128xf32>
      %42 = arith.mulf %37, %37 : vector<64x128xf32>
      %cst_26 = arith.constant dense<0.000000e+00> : vector<128xf32>
      %43 = vector.multi_reduction <add>, %42, %cst_26 [0] : vector<64x128xf32> to vector<128xf32>
      %44 = vector.shape_cast %43 : vector<128xf32> to vector<1x128xf32>
      %cst_27 = arith.constant dense<0.000000e+00> : vector<1x32xf32>
      %45 = tpu.matmul %41, %38, %cst_27 {dimension_numbers = #tpu.dot_dimension_numbers<[1], [0], [0], [1], [0, 0, 1, 1], [], []>} : vector<1x128xf32>, vector<128x32xf32>, vector<1x32xf32> -> vector<1x32xf32>
      %cst_28 = arith.constant 2.560000e+02 : f32
      %46 = vector.broadcast %cst_28 : f32 to vector<1x32xf32>
      %47 = arith.divf %45, %46 : vector<1x32xf32>
      %cst_29 = arith.constant dense<0.000000e+00> : vector<1x32xf32>
      %48 = tpu.matmul %44, %38, %cst_29 {dimension_numbers = #tpu.dot_dimension_numbers<[1], [0], [0], [1], [0, 0, 1, 1], [], []>} : vector<1x128xf32>, vector<128x32xf32>, vector<1x32xf32> -> vector<1x32xf32>
      %cst_30 = arith.constant 2.560000e+02 : f32
      %49 = vector.broadcast %cst_30 : f32 to vector<1x32xf32>
      %50 = arith.divf %48, %49 : vector<1x32xf32>
      %51 = arith.mulf %47, %47 : vector<1x32xf32>
      %52 = arith.subf %50, %51 : vector<1x32xf32>
      %cst_31 = arith.constant dense<0.000000e+00> : vector<1x128xf32>
      %53 = tpu.matmul %47, %39, %cst_31 {dimension_numbers = #tpu.dot_dimension_numbers<[1], [0], [0], [1], [0, 0, 1, 1], [], []>} : vector<1x32xf32>, vector<32x128xf32>, vector<1x128xf32> -> vector<1x128xf32>
      %cst_32 = arith.constant dense<0.000000e+00> : vector<1x128xf32>
      %54 = tpu.matmul %52, %39, %cst_32 {dimension_numbers = #tpu.dot_dimension_numbers<[1], [0], [0], [1], [0, 0, 1, 1], [], []>} : vector<1x32xf32>, vector<32x128xf32>, vector<1x128xf32> -> vector<1x128xf32>
      %55 = vector.broadcast %53 : vector<1x128xf32> to vector<64x128xf32>
      %56 = arith.subf %37, %55 : vector<64x128xf32>
      %cst_33 = arith.constant 9.99999997E-7 : f32
      %57 = vector.broadcast %cst_33 : f32 to vector<1x128xf32>
      %58 = arith.addf %54, %57 : vector<1x128xf32>
      %59 = math.rsqrt %58 : vector<1x128xf32>
      %60 = vector.broadcast %59 : vector<1x128xf32> to vector<64x128xf32>
      %61 = arith.mulf %56, %60 : vector<64x128xf32>
      %c0_34 = arith.constant 0 : index
      %c0_35 = arith.constant 0 : index
      %62 = vector.load %arg3[%c0_34, %c0_35] : memref<1x128xf32, #tpu.memory_space<vmem>>, vector<1x128xf32>
      %63 = vector.broadcast %62 : vector<1x128xf32> to vector<64x128xf32>
      %64 = arith.mulf %61, %63 : vector<64x128xf32>
      %c0_36 = arith.constant 0 : index
      %c0_37 = arith.constant 0 : index
      %65 = vector.load %arg4[%c0_36, %c0_37] : memref<1x128xf32, #tpu.memory_space<vmem>>, vector<1x128xf32>
      %66 = vector.broadcast %65 : vector<1x128xf32> to vector<64x128xf32>
      %67 = arith.addf %64, %66 : vector<64x128xf32>
      %68 = arith.truncf %67 : vector<64x128xf32> to vector<64x128xbf16>
      %c0_38 = arith.constant 0 : index
      %c0_39 = arith.constant 0 : index
      %69 = vector.load %arg7[%c0_38, %c0_39] : memref<128x384xbf16, #tpu.memory_space<vmem>>, vector<128x384xbf16>
      %cst_40 = arith.constant dense<0.000000e+00> : vector<64x384xf32>
      %70 = tpu.matmul %68, %69, %cst_40 {dimension_numbers = #tpu.dot_dimension_numbers<[1], [0], [0], [1], [0, 0, 1, 1], [], []>} : vector<64x128xbf16>, vector<128x384xbf16>, vector<64x384xf32> -> vector<64x384xf32>
      %c0_41 = arith.constant 0 : index
      %c0_42 = arith.constant 0 : index
      %71 = vector.load %arg8[%c0_41, %c0_42] : memref<1x384xf32, #tpu.memory_space<vmem>>, vector<1x384xf32>
      %72 = vector.broadcast %71 : vector<1x384xf32> to vector<64x384xf32>
      %73 = arith.addf %70, %72 : vector<64x384xf32>
      %74 = vector.extract_strided_slice %73 {offsets = [0, 0], sizes = [64, 128], strides = [1, 1]} : vector<64x384xf32> to vector<64x128xf32>
      %75 = arith.truncf %74 : vector<64x128xf32> to vector<64x128xbf16>
      %c0_43 = arith.constant 0 : index
      %c0_44 = arith.constant 0 : index
      %76 = vector.load %arg12[%c0_43, %c0_44] : memref<64x128xbf16, #tpu.memory_space<vmem>>, vector<64x128xbf16>
      tpu.vector_store %arg12[%c0_43, %c0_44], %75 {strides = array<i32>} : memref<64x128xbf16, #tpu.memory_space<vmem>>, vector<64x128xbf16>,
      %77 = vector.extract_strided_slice %73 {offsets = [0, 128], sizes = [64, 128], strides = [1, 1]} : vector<64x384xf32> to vector<64x128xf32>
      %78 = arith.truncf %77 : vector<64x128xf32> to vector<64x128xbf16>
      %c0_45 = arith.constant 0 : index
      %c0_46 = arith.constant 0 : index
      %79 = vector.load %arg13[%c0_45, %c0_46] : memref<64x128xbf16, #tpu.memory_space<vmem>>, vector<64x128xbf16>
      tpu.vector_store %arg13[%c0_45, %c0_46], %78 {strides = array<i32>} : memref<64x128xbf16, #tpu.memory_space<vmem>>, vector<64x128xbf16>,
      %80 = vector.extract_strided_slice %73 {offsets = [0, 256], sizes = [64, 128], strides = [1, 1]} : vector<64x384xf32> to vector<64x128xf32>
      %81 = arith.truncf %80 : vector<64x128xf32> to vector<64x128xbf16>
      %c0_47 = arith.constant 0 : index
      %c0_48 = arith.constant 0 : index
      %82 = vector.load %arg14[%c0_47, %c0_48] : memref<64x128xbf16, #tpu.memory_space<vmem>>, vector<64x128xbf16>
      tpu.vector_store %arg14[%c0_47, %c0_48], %81 {strides = array<i32>} : memref<64x128xbf16, #tpu.memory_space<vmem>>, vector<64x128xbf16>,
    } else {
    }
    %c64_i32 = arith.constant 64 : i32
    %3 = arith.muli %arg1, %c64_i32 : i32
    %4 = tpu.assume_multiple %3, 64 : i32
    %5 = arith.index_cast %4 : i32 to index
    %c0 = arith.constant 0 : index
    %6 = vector.load %arg12[%5, %c0] : memref<64x128xbf16, #tpu.memory_space<vmem>>, vector<64x128xbf16>
    %c0_1 = arith.constant 0 : index
    %c0_2 = arith.constant 0 : index
    %7 = vector.load %arg13[%c0_1, %c0_2] : memref<64x128xbf16, #tpu.memory_space<vmem>>, vector<64x128xbf16>
    %cst = arith.constant dense<0.000000e+00> : vector<64x64xf32>
    %8 = tpu.matmul %6, %7, %cst {dimension_numbers = #tpu.dot_dimension_numbers<[1], [1], [0], [0], [0, 0, 1, 0], [], []>} : vector<64x128xbf16>, vector<64x128xbf16>, vector<64x64xf32> -> vector<64x64xf32>
    %cst_3 = arith.constant dense<0xFF800000> : vector<64xf32>
    %9 = vector.multi_reduction <maximumf>, %8, %cst_3 [1] : vector<64x64xf32> to vector<64xf32>
    %10 = vector.shape_cast %9 : vector<64xf32> to vector<64x1xf32>
    %11 = vector.broadcast %10 : vector<64x1xf32> to vector<64x64xf32>
    %12 = arith.subf %8, %11 : vector<64x64xf32>
    %13 = arith.truncf %12 : vector<64x64xf32> to vector<64x64xbf16>
    %14 = math.exp %13 : vector<64x64xbf16>
    %15 = arith.extf %14 : vector<64x64xbf16> to vector<64x64xf32>
    %cst_4 = arith.constant dense<0.000000e+00> : vector<64xf32>
    %16 = vector.multi_reduction <add>, %15, %cst_4 [1] : vector<64x64xf32> to vector<64xf32>
    %17 = vector.shape_cast %16 : vector<64xf32> to vector<64x1xf32>
    %c0_5 = arith.constant 0 : index
    %c0_6 = arith.constant 0 : index
    %18 = vector.load %arg14[%c0_5, %c0_6] : memref<64x128xbf16, #tpu.memory_space<vmem>>, vector<64x128xbf16>
    %cst_7 = arith.constant dense<0.000000e+00> : vector<64x128xf32>
    %19 = tpu.matmul %14, %18, %cst_7 {dimension_numbers = #tpu.dot_dimension_numbers<[1], [0], [0], [1], [0, 0, 1, 1], [], []>} : vector<64x64xbf16>, vector<64x128xbf16>, vector<64x128xf32> -> vector<64x128xf32>
    %20 = tpu.reciprocal %17 : vector<64x1xf32> -> vector<64x1xf32>
    %21 = vector.broadcast %20 : vector<64x1xf32> to vector<64x128xf32>
    %22 = arith.mulf %19, %21 : vector<64x128xf32>
    %23 = arith.truncf %22 : vector<64x128xf32> to vector<64x128xbf16>
    %c0_8 = arith.constant 0 : index
    %c0_9 = arith.constant 0 : index
    %24 = vector.load %arg9[%c0_8, %c0_9] : memref<128x128xbf16, #tpu.memory_space<vmem>>, vector<128x128xbf16>
    %cst_10 = arith.constant dense<0.000000e+00> : vector<64x128xf32>
    %25 = tpu.matmul %23, %24, %cst_10 {dimension_numbers = #tpu.dot_dimension_numbers<[1], [0], [0], [1], [0, 0, 1, 1], [], []>} : vector<64x128xbf16>, vector<128x128xbf16>, vector<64x128xf32> -> vector<64x128xf32>
    %c0_11 = arith.constant 0 : index
    %c0_12 = arith.constant 0 : index
    %26 = vector.load %arg10[%c0_11, %c0_12] : memref<1x128xf32, #tpu.memory_space<vmem>>, vector<1x128xf32>
    %27 = vector.broadcast %26 : vector<1x128xf32> to vector<64x128xf32>
    %28 = arith.addf %25, %27 : vector<64x128xf32>
    %c0_13 = arith.constant 0 : index
    %29 = arith.index_cast %4 : i32 to index
    %c0_14 = arith.constant 0 : index
    %30 = vector.load %arg2[%c0_13, %29, %c0_14] : memref<1x64x128xf32, #tpu.memory_space<vmem>>, vector<1x64x128xf32>
    %31 = vector.shape_cast %30 : vector<1x64x128xf32> to vector<64x128xf32>
    %32 = arith.addf %31, %28 : vector<64x128xf32>
    %c0_15 = arith.constant 0 : index
    %c0_16 = arith.constant 0 : index
    %c0_17 = arith.constant 0 : index
    %33 = vector.load %arg11[%c0_15, %c0_16, %c0_17] : memref<1x64x128xf32, #tpu.memory_space<vmem>>, vector<1x64x128xf32>
    %34 = vector.shape_cast %33 : vector<1x64x128xf32> to vector<64x128xf32>
    %35 = vector.shape_cast %32 : vector<64x128xf32> to vector<1x64x128xf32>
    tpu.vector_store %arg11[%c0_15, %c0_16, %c0_17], %35 {strides = array<i32>} : memref<1x64x128xf32, #tpu.memory_space<vmem>>, vector<1x64x128xf32>,
    return
  }
  func.func @transform_0(%arg0: i32, %arg1: i32) -> (i32, i32, i32) {
    %c0_i32 = arith.constant 0 : i32
    %c0_i32_0 = arith.constant 0 : i32
    %c0_i32_1 = arith.constant 0 : i32
    return %arg0, %c0_i32, %c0_i32_0 : i32, i32, i32
  }
  func.func @transform_1(%arg0: i32, %arg1: i32) -> (i32, i32) {
    %c0_i32 = arith.constant 0 : i32
    %c0_i32_0 = arith.constant 0 : i32
    %c0_i32_1 = arith.constant 0 : i32
    return %c0_i32, %c0_i32_0 : i32, i32
  }
  func.func @transform_2(%arg0: i32, %arg1: i32) -> (i32, i32) {
    %c0_i32 = arith.constant 0 : i32
    %c0_i32_0 = arith.constant 0 : i32
    %c0_i32_1 = arith.constant 0 : i32
    return %c0_i32, %c0_i32_0 : i32, i32
  }
  func.func @transform_3(%arg0: i32, %arg1: i32) -> (i32, i32) {
    %c0_i32 = arith.constant 0 : i32
    %c0_i32_0 = arith.constant 0 : i32
    %c0_i32_1 = arith.constant 0 : i32
    return %c0_i32, %c0_i32_0 : i32, i32
  }
  func.func @transform_4(%arg0: i32, %arg1: i32) -> (i32, i32) {
    %c0_i32 = arith.constant 0 : i32
    %c0_i32_0 = arith.constant 0 : i32
    %c0_i32_1 = arith.constant 0 : i32
    return %c0_i32, %c0_i32_0 : i32, i32
  }
  func.func @transform_5(%arg0: i32, %arg1: i32) -> (i32, i32) {
    %c0_i32 = arith.constant 0 : i32
    %c0_i32_0 = arith.constant 0 : i32
    %c0_i32_1 = arith.constant 0 : i32
    return %c0_i32, %c0_i32_0 : i32, i32
  }
  func.func @transform_6(%arg0: i32, %arg1: i32) -> (i32, i32) {
    %c0_i32 = arith.constant 0 : i32
    %c0_i32_0 = arith.constant 0 : i32
    %c0_i32_1 = arith.constant 0 : i32
    return %c0_i32, %c0_i32_0 : i32, i32
  }
  func.func @transform_7(%arg0: i32, %arg1: i32) -> (i32, i32) {
    %c0_i32 = arith.constant 0 : i32
    %c0_i32_0 = arith.constant 0 : i32
    %c0_i32_1 = arith.constant 0 : i32
    return %c0_i32, %c0_i32_0 : i32, i32
  }
  func.func @transform_8(%arg0: i32, %arg1: i32) -> (i32, i32) {
    %c0_i32 = arith.constant 0 : i32
    %c0_i32_0 = arith.constant 0 : i32
    %c0_i32_1 = arith.constant 0 : i32
    return %c0_i32, %c0_i32_0 : i32, i32
  }
  func.func @transform_9(%arg0: i32, %arg1: i32) -> (i32, i32, i32) {
    %c0_i32 = arith.constant 0 : i32
    %c0_i32_0 = arith.constant 0 : i32
    return %arg0, %arg1, %c0_i32 : i32, i32, i32
  }
}

</mosaic_0001>

<llo_original>
// kernel: tpu_custom_call.1
$region0: #{tpu_custom_call.1}
  #allocation0 [shape = 'u32[]', space=smem, size = 0x4, offset = 0x4, fixed_abs, tag = 'smem constant byte address 0x4 - core index']
  #allocation1 [shape = 'u32[72,128]{1,0:T(1,128)}', space=vmem, size = 0x9000, scoped, tag = 'internal scratch']
  #allocation2 [shape = 'bf16[64,128]{1,0:T(8,128)(2,1)}', space=vmem, size = 0x4000, scoped, tag = 'scratch operand']
  #allocation3 [shape = 'bf16[64,128]{1,0:T(8,128)(2,1)}', space=vmem, size = 0x4000, scoped, tag = 'scratch operand']
  #allocation4 [shape = 'bf16[64,128]{1,0:T(8,128)(2,1)}', space=vmem, size = 0x4000, scoped, tag = 'scratch operand']
  %s0 = inlined_call_operand.vmem [shape: f32[2,64,128], index: 0, kind: input, shape index: {}]
  %s1 = inlined_call_operand.hbm [shape: f32[1,128], index: 1, kind: input, shape index: {}]
  %s2 = inlined_call_operand.hbm [shape: f32[1,128], index: 2, kind: input, shape index: {}]
  %s3 = inlined_call_operand.vmem [shape: f32[128,32], index: 3, kind: input, shape index: {}]
  %s4 = inlined_call_operand.vmem [shape: f32[32,128], index: 4, kind: input, shape index: {}]
  %s5 = inlined_call_operand.hbm [shape: bf16[128,384], index: 5, kind: input, shape index: {}]
  %s6 = inlined_call_operand.vmem [shape: f32[1,384], index: 6, kind: input, shape index: {}]
  %s7 = inlined_call_operand.hbm [shape: bf16[128,128], index: 7, kind: input, shape index: {}]
  %s8 = inlined_call_operand.vmem [shape: f32[1,128], index: 8, kind: input, shape index: {}]
  %s9 = inlined_call_operand.hbm [shape: f32[2,64,128], index: 9, kind: output, shape index: {}]
  %s10 = sld [smem:[#allocation0]]
  $region89: #{tpu_custom_call.1} parent=0
    _
  %s12 = ssub.s32 1, %s10
  %s13 = scalar_select 0, %s12, %s10
  $region1: #{tpu_custom_call.1} parent=0
    #allocation5 [shape = 'u8[512]{0}', space=vmem, size = 0x400, scoped, tag = 'input window, operand 1, single buffered']
    #allocation6 [shape = 's32[2]{0}', space=sflag, size = 0x8, scoped, tag = 'scoped memory for tpu_custom_call.1']
    #allocation7 [shape = 's32[2]{0}', space=sflag, size = 0x8, scoped, tag = 'scoped memory for tpu_custom_call.1']
    #allocation8 [shape = 'u8[512]{0}', space=vmem, size = 0x400, scoped, tag = 'input window, operand 2, single buffered']
    #allocation9 [shape = 's32[1]{0}', space=sflag, size = 0x4, scoped, tag = 'scoped memory for tpu_custom_call.1']
    #allocation10 [shape = 'u8[98304]{0}', space=vmem, size = 0x18000, scoped, tag = 'input window, operand 5, single buffered']
    #allocation11 [shape = 'u8[32768]{0}', space=vmem, size = 0x8000, scoped, tag = 'input window, operand 7, single buffered']
    #allocation12 [shape = 's32[1]{0}', space=sflag, size = 0x4, scoped, tag = 'scoped memory for tpu_custom_call.1']
    #allocation13 [shape = 'u8[65536]{0}', space=vmem, size = 0x10000, scoped, tag = 'output window, operand 0']
    %14 = vsyncpa [#allocation6], 0
    %15 = vsyncpa [#allocation9], 0
    %16 = vsyncpa [#allocation12], 0
    %17 = vsyncpa [#allocation7], 0
    %s18 = scalar_lea.sflag [#allocation7], 1
    %19 = vsyncpa %s18, 0
    loop: start=0, step=1, limit=4
    $region2: #{tpu_custom_call.1} parent=1 // loop_pre_header
      _
    $region3: #{tpu_custom_call.1} parent=1 // loop_header
      %s21 = sphi 0, %s25
      %p22 = scmp.ge.s32.totalorder %s21, 4
      %s28 = sphi 0, %s40
      %s29 = sphi 0, %s36
      %s30 = sphi 0, %s28
      %s31 = sphi 0, %s29
      %s32 = sphi 0, %s30
      %s33 = sphi 0, %s31
      %s43 = sphi 0, %s45
      %s46 = sphi 0, %s43
      %s47 = sphi 0, %s46
      %s63 = sphi 0, %s47
      %s67 = sphi 0, %s67
      %s69 = sphi 0, %s67
      %s70 = sphi 0, %s69
      %s84 = sphi 0, %s70
      %s88 = sphi 0, %s88
      %s90 = sphi 0, %s88
      %s91 = sphi 0, %s90
      %s105 = sphi 0, %s91
      %s109 = sphi 0, %s109
      %s111 = sphi 0, %s109
      %s112 = sphi 0, %s111
      %s126 = sphi 0, %s112
      %s130 = sphi 0, %s130
      %s132 = sphi 0, %s130
      %s133 = sphi 0, %s132
      %s147 = sphi 0, %s133
      %s151 = sphi 0, %s151
      %s153 = sphi 0, %s151
      %s154 = sphi 0, %s153
      %s168 = sphi 0, %s154
      %s172 = sphi 0, %s172
      %s174 = sphi 0, %s172
      %s175 = sphi 0, %s174
      %s189 = sphi 0, %s175
      %s193 = sphi 0, %s193
      %s195 = sphi 0, %s193
      %s196 = sphi 0, %s195
      %s210 = sphi 0, %s196
      %s214 = sphi 0, %s214
      %s216 = sphi 0, %s214
      %s217 = sphi 0, %s216
      %s231 = sphi 0, %s217
      %s239 = sphi 0, %s241
      %s242 = sphi 0, %s239
      %s243 = sphi 0, %s242
      %s259 = sphi 0, %s243
    $region4: #{tpu_custom_call.1} parent=1 // loop_header_branch
      %24 = sbr.rel (%p22) target = $region8
    $region5: #{tpu_custom_call.1} parent=1 // loop_body
      %s26 = ssub.s32 %s21, 1
      %s27 = ssub.s32 %s21, 2
      %s34 = sadd.s32 1, %s29
      %p35 = scmp.ge.s32.totalorder %s34, 1
      %s36 = scalar_select %p35, 0, %s34
      %s37 = sadd.s32 1, %s28
      %s38 = scalar_select %p35, %s37, %s28
      %p39 = scmp.ge.s32.totalorder %s38, 2
      %s40 = scalar_select %p39, 0, %s38
      %s41 = ssub.s32 %s28, %s40
      %p42 = scmp.eq.s32.totalorder %s41, 0
      %s44 = sadd.s32 %s43, 1
      %s45 = scalar_select %p42, %s43, %s44
      %p48 = pneg %p42
      %p49 = scmp.eq.s32.totalorder %s21, 1
      %p50 = por %p48, %p49
      %p51 = scmp.ne.s32.totalorder %s43, %s46
      %p52 = scmp.eq.s32.totalorder %s21, 0
      %p53 = por %p51, %p52
      %p54 = scmp.ne.s32.totalorder %s43, %s46
      %p55 = scmp.eq.s32.totalorder %s26, 1
      %p56 = por %p54, %p55
      %p57 = scmp.ne.s32.totalorder %s46, %s47
      %p58 = scmp.eq.s32.totalorder %s26, 0
      %p59 = por %p57, %p58
      %p60 = scmp.ne.s32.totalorder %s46, %s47
      %p61 = scmp.eq.s32.totalorder %s27, 1
      %p62 = por %p60, %p61
      %p64 = scmp.ne.s32.totalorder %s47, %s63
      %p65 = scmp.eq.s32.totalorder %s27, 0
      %p66 = por %p64, %p65
      %s68 = sadd.s32 %s67, 1
      %p71 = scmp.eq.s32.totalorder %s21, 1
      %p72 = scmp.ne.s32.totalorder %s67, %s69
      %p73 = scmp.eq.s32.totalorder %s21, 0
      %p74 = por %p72, %p73
      %p75 = scmp.ne.s32.totalorder %s67, %s69
      %p76 = scmp.eq.s32.totalorder %s26, 1
      %p77 = por %p75, %p76
      %p78 = scmp.ne.s32.totalorder %s69, %s70
      %p79 = scmp.eq.s32.totalorder %s26, 0
      %p80 = por %p78, %p79
      %p81 = scmp.ne.s32.totalorder %s69, %s70
      %p82 = scmp.eq.s32.totalorder %s27, 1
      %p83 = por %p81, %p82
      %p85 = scmp.ne.s32.totalorder %s70, %s84
      %p86 = scmp.eq.s32.totalorder %s27, 0
      %p87 = por %p85, %p86
      %s89 = sadd.s32 %s88, 1
      %p92 = scmp.eq.s32.totalorder %s21, 1
      %p93 = scmp.ne.s32.totalorder %s88, %s90
      %p94 = scmp.eq.s32.totalorder %s21, 0
      %p95 = por %p93, %p94
      %p96 = scmp.ne.s32.totalorder %s88, %s90
      %p97 = scmp.eq.s32.totalorder %s26, 1
      %p98 = por %p96, %p97
      %p99 = scmp.ne.s32.totalorder %s90, %s91
      %p100 = scmp.eq.s32.totalorder %s26, 0
      %p101 = por %p99, %p100
      %p102 = scmp.ne.s32.totalorder %s90, %s91
      %p103 = scmp.eq.s32.totalorder %s27, 1
      %p104 = por %p102, %p103
      %p106 = scmp.ne.s32.totalorder %s91, %s105
      %p107 = scmp.eq.s32.totalorder %s27, 0
      %p108 = por %p106, %p107
      %s110 = sadd.s32 %s109, 1
      %p113 = scmp.eq.s32.totalorder %s21, 1
      %p114 = scmp.ne.s32.totalorder %s109, %s111
      %p115 = scmp.eq.s32.totalorder %s21, 0
      %p116 = por %p114, %p115
      %p117 = scmp.ne.s32.totalorder %s109, %s111
      %p118 = scmp.eq.s32.totalorder %s26, 1
      %p119 = por %p117, %p118
      %p120 = scmp.ne.s32.totalorder %s111, %s112
      %p121 = scmp.eq.s32.totalorder %s26, 0
      %p122 = por %p120, %p121
      %p123 = scmp.ne.s32.totalorder %s111, %s112
      %p124 = scmp.eq.s32.totalorder %s27, 1
      %p125 = por %p123, %p124
      %p127 = scmp.ne.s32.totalorder %s112, %s126
      %p128 = scmp.eq.s32.totalorder %s27, 0
      %p129 = por %p127, %p128
      %s131 = sadd.s32 %s130, 1
      %p134 = scmp.eq.s32.totalorder %s21, 1
      %p135 = scmp.ne.s32.totalorder %s130, %s132
      %p136 = scmp.eq.s32.totalorder %s21, 0
      %p137 = por %p135, %p136
      %p138 = scmp.ne.s32.totalorder %s130, %s132
      %p139 = scmp.eq.s32.totalorder %s26, 1
      %p140 = por %p138, %p139
      %p141 = scmp.ne.s32.totalorder %s132, %s133
      %p142 = scmp.eq.s32.totalorder %s26, 0
      %p143 = por %p141, %p142
      %p144 = scmp.ne.s32.totalorder %s132, %s133
      %p145 = scmp.eq.s32.totalorder %s27, 1
      %p146 = por %p144, %p145
      %p148 = scmp.ne.s32.totalorder %s133, %s147
      %p149 = scmp.eq.s32.totalorder %s27, 0
      %p150 = por %p148, %p149
      %s152 = sadd.s32 %s151, 1
      %p155 = scmp.eq.s32.totalorder %s21, 1
      %p156 = scmp.ne.s32.totalorder %s151, %s153
      %p157 = scmp.eq.s32.totalorder %s21, 0
      %p158 = por %p156, %p157
      %p159 = scmp.ne.s32.totalorder %s151, %s153
      %p160 = scmp.eq.s32.totalorder %s26, 1
      %p161 = por %p159, %p160
      %p162 = scmp.ne.s32.totalorder %s153, %s154
      %p163 = scmp.eq.s32.totalorder %s26, 0
      %p164 = por %p162, %p163
      %p165 = scmp.ne.s32.totalorder %s153, %s154
      %p166 = scmp.eq.s32.totalorder %s27, 1
      %p167 = por %p165, %p166
      %p169 = scmp.ne.s32.totalorder %s154, %s168
      %p170 = scmp.eq.s32.totalorder %s27, 0
      %p171 = por %p169, %p170
      %s173 = sadd.s32 %s172, 1
      %p176 = scmp.eq.s32.totalorder %s21, 1
      %p177 = scmp.ne.s32.totalorder %s172, %s174
      %p178 = scmp.eq.s32.totalorder %s21, 0
      %p179 = por %p177, %p178
      %p180 = scmp.ne.s32.totalorder %s172, %s174
      %p181 = scmp.eq.s32.totalorder %s26, 1
      %p182 = por %p180, %p181
      %p183 = scmp.ne.s32.totalorder %s174, %s175
      %p184 = scmp.eq.s32.totalorder %s26, 0
      %p185 = por %p183, %p184
      %p186 = scmp.ne.s32.totalorder %s174, %s175
      %p187 = scmp.eq.s32.totalorder %s27, 1
      %p188 = por %p186, %p187
      %p190 = scmp.ne.s32.totalorder %s175, %s189
      %p191 = scmp.eq.s32.totalorder %s27, 0
      %p192 = por %p190, %p191
      %s194 = sadd.s32 %s193, 1
      %p197 = scmp.eq.s32.totalorder %s21, 1
      %p198 = scmp.ne.s32.totalorder %s193, %s195
      %p199 = scmp.eq.s32.totalorder %s21, 0
      %p200 = por %p198, %p199
      %p201 = scmp.ne.s32.totalorder %s193, %s195
      %p202 = scmp.eq.s32.totalorder %s26, 1
      %p203 = por %p201, %p202
      %p204 = scmp.ne.s32.totalorder %s195, %s196
      %p205 = scmp.eq.s32.totalorder %s26, 0
      %p206 = por %p204, %p205
      %p207 = scmp.ne.s32.totalorder %s195, %s196
      %p208 = scmp.eq.s32.totalorder %s27, 1
      %p209 = por %p207, %p208
      %p211 = scmp.ne.s32.totalorder %s196, %s210
      %p212 = scmp.eq.s32.totalorder %s27, 0
      %p213 = por %p211, %p212
      %s215 = sadd.s32 %s214, 1
      %p218 = scmp.eq.s32.totalorder %s21, 1
      %p219 = scmp.ne.s32.totalorder %s214, %s216
      %p220 = scmp.eq.s32.totalorder %s21, 0
      %p221 = por %p219, %p220
      %p222 = scmp.ne.s32.totalorder %s214, %s216
      %p223 = scmp.eq.s32.totalorder %s26, 1
      %p224 = por %p222, %p223
      %p225 = scmp.ne.s32.totalorder %s216, %s217
      %p226 = scmp.eq.s32.totalorder %s26, 0
      %p227 = por %p225, %p226
      %p228 = scmp.ne.s32.totalorder %s216, %s217
      %p229 = scmp.eq.s32.totalorder %s27, 1
      %p230 = por %p228, %p229
      %p232 = scmp.ne.s32.totalorder %s217, %s231
      %p233 = scmp.eq.s32.totalorder %s27, 0
      %p234 = por %p232, %p233
      %s235 = ssub.s32 %s28, %s40
      %s236 = ssub.s32 %s29, %s36
      %s237 = sor.u32 %s235, %s236
      %p238 = scmp.eq.s32.totalorder %s237, 0
      %s240 = sadd.s32 %s239, 1
      %s241 = scalar_select %p238, %s239, %s240
      %p244 = pneg %p238
      %p245 = scmp.eq.s32.totalorder %s21, 1
      %p246 = por %p244, %p245
      %p247 = scmp.ne.s32.totalorder %s239, %s242
      %p248 = scmp.eq.s32.totalorder %s21, 0
      %p249 = por %p247, %p248
      %p250 = scmp.ne.s32.totalorder %s239, %s242
      %p251 = scmp.eq.s32.totalorder %s26, 1
      %p252 = por %p250, %p251
      %p253 = scmp.ne.s32.totalorder %s242, %s243
      %p254 = scmp.eq.s32.totalorder %s26, 0
      %p255 = por %p253, %p254
      %p256 = scmp.ne.s32.totalorder %s242, %s243
      %p257 = scmp.eq.s32.totalorder %s27, 1
      %p258 = por %p256, %p257
      %p260 = scmp.ne.s32.totalorder %s243, %s259
      %p261 = scmp.eq.s32.totalorder %s27, 0
      %p262 = por %p260, %p261
      %p263 = scmp.le.s32.totalorder 1, %s21
      %p264 = scmp.lt.s32.totalorder %s21, 3
      %p265 = pnand %p263, %p264
      %p266 = pneg %p265
      // Predicated region
      $region9: #{tpu_custom_call.1} parent=5 // pred_check
        _
      $region10: #{tpu_custom_call.1} parent=5 // pred_check_branch
        %268 = sbr.rel (%p265) target = $region12
      $region11: #{tpu_custom_call.1} parent=5 // pred_region
        %s269 = ssub.s32 %s21, 1
        // Predicated region
        $region13: #{tpu_custom_call.1} parent=11 // pred_check
          %p270 = pneg %p80
        $region14: #{tpu_custom_call.1} parent=11 // pred_check_branch
          %272 = sbr.rel (%p270) target = $region16
        $region15: #{tpu_custom_call.1} parent=11 // pred_region
          %274 = vsyncadd [#allocation6], 0
          %s276 = sshll.u32 %s1, 4
          %s277 = int_to_ptr.hbm [resolvable:$true] %s276
          %s278 = sshll.u32 [#allocation5], 4
          %s279 = int_to_ptr.vmem [resolvable:$true] %s278
          %281 = dma.hbm_to_vmem [thread:$0]  %s277, 16, %s279, [#allocation6]
        $region16: #{tpu_custom_call.1} parent=11 // pred_fallthru
          _
        // Predicated region
        $region17: #{tpu_custom_call.1} parent=11 // pred_check
          %p282 = pneg %p101
        $region18: #{tpu_custom_call.1} parent=11 // pred_check_branch
          %284 = sbr.rel (%p282) target = $region20
        $region19: #{tpu_custom_call.1} parent=11 // pred_region
          %286 = vsyncadd [#allocation9], 0
          %s288 = sshll.u32 %s2, 4
          %s289 = int_to_ptr.hbm [resolvable:$true] %s288
          %s290 = sshll.u32 [#allocation8], 4
          %s291 = int_to_ptr.vmem [resolvable:$true] %s290
          %293 = dma.hbm_to_vmem [thread:$0]  %s289, 16, %s291, [#allocation9]
        $region20: #{tpu_custom_call.1} parent=11 // pred_fallthru
          _
        // Predicated region
        $region21: #{tpu_custom_call.1} parent=11 // pred_check
          %p294 = pneg %p122
        $region22: #{tpu_custom_call.1} parent=11 // pred_check_branch
          %296 = sbr.rel (%p294) target = $region24
        $region23: #{tpu_custom_call.1} parent=11 // pred_region
          _
        $region24: #{tpu_custom_call.1} parent=11 // pred_fallthru
          _
        // Predicated region
        $region25: #{tpu_custom_call.1} parent=11 // pred_check
          %p297 = pneg %p143
        $region26: #{tpu_custom_call.1} parent=11 // pred_check_branch
          %299 = sbr.rel (%p297) target = $region28
        $region27: #{tpu_custom_call.1} parent=11 // pred_region
          _
        $region28: #{tpu_custom_call.1} parent=11 // pred_fallthru
          _
        // Predicated region
        $region29: #{tpu_custom_call.1} parent=11 // pred_check
          %p300 = pneg %p164
        $region30: #{tpu_custom_call.1} parent=11 // pred_check_branch
          %302 = sbr.rel (%p300) target = $region32
        $region31: #{tpu_custom_call.1} parent=11 // pred_region
          %304 = vsyncadd [#allocation9], 0
          %s305 = sshll.u32 %s5, 4
          %s306 = int_to_ptr.hbm [resolvable:$true] %s305
          %s307 = sshll.u32 [#allocation10], 4
          %s308 = int_to_ptr.vmem [resolvable:$true] %s307
          %313 = dma.hbm_to_vmem [thread:$0]  %s306, 3072, %s308, [#allocation9], 192, 192, 12
        $region32: #{tpu_custom_call.1} parent=11 // pred_fallthru
          _
        // Predicated region
        $region33: #{tpu_custom_call.1} parent=11 // pred_check
          %p314 = pneg %p185
        $region34: #{tpu_custom_call.1} parent=11 // pred_check_branch
          %316 = sbr.rel (%p314) target = $region36
        $region35: #{tpu_custom_call.1} parent=11 // pred_region
          _
        $region36: #{tpu_custom_call.1} parent=11 // pred_fallthru
          _
        // Predicated region
        $region37: #{tpu_custom_call.1} parent=11 // pred_check
          %p317 = pneg %p206
        $region38: #{tpu_custom_call.1} parent=11 // pred_check_branch
          %319 = sbr.rel (%p317) target = $region40
        $region39: #{tpu_custom_call.1} parent=11 // pred_region
          %321 = vsyncadd [#allocation12], 0
          %s322 = sshll.u32 %s7, 4
          %s323 = int_to_ptr.hbm [resolvable:$true] %s322
          %s324 = sshll.u32 [#allocation11], 4
          %s325 = int_to_ptr.vmem [resolvable:$true] %s324
          %330 = dma.hbm_to_vmem [thread:$0]  %s323, 1024, %s325, [#allocation12], 64, 64, 4
        $region40: #{tpu_custom_call.1} parent=11 // pred_fallthru
          _
        // Predicated region
        $region41: #{tpu_custom_call.1} parent=11 // pred_check
          %p331 = pneg %p227
        $region42: #{tpu_custom_call.1} parent=11 // pred_check_branch
          %333 = sbr.rel (%p331) target = $region44
        $region43: #{tpu_custom_call.1} parent=11 // pred_region
          _
        $region44: #{tpu_custom_call.1} parent=11 // pred_fallthru
          _
      $region12: #{tpu_custom_call.1} parent=5 // pred_fallthru
        _
      %p334 = scmp.lt.s32.totalorder %s21, 2
      // Predicated region
      $region45: #{tpu_custom_call.1} parent=5 // pred_check
        %p335 = pneg %p334
      $region46: #{tpu_custom_call.1} parent=5 // pred_check_branch
        %337 = sbr.rel (%p335) target = $region48
      $region47: #{tpu_custom_call.1} parent=5 // pred_region
        // Predicated region
        $region49: #{tpu_custom_call.1} parent=47 // pred_check
          %p338 = pneg %p53
        $region50: #{tpu_custom_call.1} parent=47 // pred_check_branch
          %340 = sbr.rel (%p338) target = $region52
        $region51: #{tpu_custom_call.1} parent=47 // pred_region
          %p341 = scmp.lt.s32.totalorder %s28, 1
          %s342 = scalar_select %p341, %s28, 1
          %s343 = smul.addr %s342, 8
          %s344 = smul.addr %s343, 8
          %s345 = scalar_lea.vmem %s0, %s344
        $region52: #{tpu_custom_call.1} parent=47 // pred_fallthru
          _
      $region48: #{tpu_custom_call.1} parent=5 // pred_fallthru
        _
      %p346 = scmp.le.s32.totalorder 1, %s21
      %p347 = scmp.lt.s32.totalorder %s21, 3
      %p348 = pnand %p346, %p347
      %p349 = pneg %p348
      // Predicated region
      $region53: #{tpu_custom_call.1} parent=5 // pred_check
        _
      $region54: #{tpu_custom_call.1} parent=5 // pred_check_branch
        %351 = sbr.rel (%p348) target = $region56
      $region55: #{tpu_custom_call.1} parent=5 // pred_region
        %s352 = ssub.s32 %s21, 1
        // Predicated region
        $region57: #{tpu_custom_call.1} parent=55 // pred_check
          %p353 = pneg %p80
        $region58: #{tpu_custom_call.1} parent=55 // pred_check_branch
          %355 = sbr.rel (%p353) target = $region60
        $region59: #{tpu_custom_call.1} parent=55 // pred_region
          %357 = dma.done [#allocation6], 16
        $region60: #{tpu_custom_call.1} parent=55 // pred_fallthru
          _
        // Predicated region
        $region61: #{tpu_custom_call.1} parent=55 // pred_check
          %p358 = pneg %p101
        $region62: #{tpu_custom_call.1} parent=55 // pred_check_branch
          %360 = sbr.rel (%p358) target = $region64
        $region63: #{tpu_custom_call.1} parent=55 // pred_region
          %362 = dma.done [#allocation9], 16
        $region64: #{tpu_custom_call.1} parent=55 // pred_fallthru
          _
        // Predicated region
        $region65: #{tpu_custom_call.1} parent=55 // pred_check
          %p363 = pneg %p164
        $region66: #{tpu_custom_call.1} parent=55 // pred_check_branch
          %365 = sbr.rel (%p363) target = $region68
        $region67: #{tpu_custom_call.1} parent=55 // pred_region
          %367 = dma.done [#allocation9], 3072
        $region68: #{tpu_custom_call.1} parent=55 // pred_fallthru
          _
        // Predicated region
        $region69: #{tpu_custom_call.1} parent=55 // pred_check
          %p368 = pneg %p206
        $region70: #{tpu_custom_call.1} parent=55 // pred_check_branch
          %370 = sbr.rel (%p368) target = $region72
        $region71: #{tpu_custom_call.1} parent=55 // pred_region
          %372 = dma.done [#allocation12], 1024
        $region72: #{tpu_custom_call.1} parent=55 // pred_fallthru
          _
        %p373 = scmp.lt.s32.totalorder %s30, 1
        %s374 = scalar_select %p373, %s30, 1
        %s375 = smul.addr %s374, 8
        %s376 = smul.addr %s375, 8
        %s377 = scalar_lea.vmem %s0, %s376
        %p378 = pneg %p59
        %p379 = pneg %p56
        %p380 = pneg %p80
        %p381 = pneg %p77
        %p382 = pneg %p101
        %p383 = pneg %p98
        %p384 = pneg %p122
        %p385 = pneg %p119
        %p386 = pneg %p143
        %p387 = pneg %p140
        %p388 = pneg %p164
        %p389 = pneg %p161
        %p390 = pneg %p185
        %p391 = pneg %p182
        %p392 = pneg %p206
        %p393 = pneg %p203
        %p394 = pneg %p227
        %p395 = pneg %p224
        %p396 = pneg %p255
        %p397 = pneg %p252
        %s398 = sand.u32 %s242, 1
        %s399 = scalar_lea.sflag [#allocation7], %s398
        %s400 = sand.u32 %s242, 1
        %s401 = smul.addr %s400, 64
        %s402 = scalar_lea.vmem [#allocation13], %s401
        %p403 = scmp.lt.s32.totalorder %s30, 1
        %s404 = scalar_select %p403, %s30, 1
        %s405 = smul.addr %s404, 8
        %s406 = smul.addr %s405, 8
        %s407 = scalar_lea.vmem %s0, %s406
        %s408 = smul.u32 8, %s31
        %p410 = scmp.eq.s32.totalorder %s31, 0
        // Predicated region
        $region73: #{tpu_custom_call.1} parent=55 // pred_check
          %p411 = pneg %p410
        $region74: #{tpu_custom_call.1} parent=55 // pred_check_branch
          %413 = sbr.rel (%p411) target = $region76
        $region75: #{tpu_custom_call.1} parent=55 // pred_region
          %v414 = vld [vmem:[%s407] sm:$0xff]
          %v415 = vld [vmem:[%s407 + $0x8] sm:$0xff]
          %v416 = vld [vmem:[%s407 + $0x10] sm:$0xff]
          %v417 = vld [vmem:[%s407 + $0x18] sm:$0xff]
          %v418 = vld [vmem:[%s407 + $0x20] sm:$0xff]
          %v419 = vld [vmem:[%s407 + $0x28] sm:$0xff]
          %v420 = vld [vmem:[%s407 + $0x30] sm:$0xff]
          %v421 = vld [vmem:[%s407 + $0x38] sm:$0xff]
          %v422 = vld [vmem:[%s3] sm:$0xff]
          %v423 = vld [vmem:[%s3 + $0x8] sm:$0xff]
          %v424 = vld [vmem:[%s3 + $0x10] sm:$0xff]
          %v425 = vld [vmem:[%s3 + $0x18] sm:$0xff]
          %v426 = vld [vmem:[%s3 + $0x20] sm:$0xff]
          %v427 = vld [vmem:[%s3 + $0x28] sm:$0xff]
          %v428 = vld [vmem:[%s3 + $0x30] sm:$0xff]
          %v429 = vld [vmem:[%s3 + $0x38] sm:$0xff]
          %v430 = vld [vmem:[%s3 + $0x40] sm:$0xff]
          %v431 = vld [vmem:[%s3 + $0x48] sm:$0xff]
          %v432 = vld [vmem:[%s3 + $0x50] sm:$0xff]
          %v433 = vld [vmem:[%s3 + $0x58] sm:$0xff]
          %v434 = vld [vmem:[%s3 + $0x60] sm:$0xff]
          %v435 = vld [vmem:[%s3 + $0x68] sm:$0xff]
          %v436 = vld [vmem:[%s3 + $0x70] sm:$0xff]
          %v437 = vld [vmem:[%s3 + $0x78] sm:$0xff]
          %v438 = vld [vmem:[%s4] sm:$0xff]
          %v439 = vld [vmem:[%s4 + $0x8] sm:$0xff]
          %v440 = vld [vmem:[%s4 + $0x10] sm:$0xff]
          %v441 = vld [vmem:[%s4 + $0x18] sm:$0xff]
          %v442 = vadd.f32 %v414, %v415
          %v443 = vadd.f32 %v442, %v416
          %v444 = vadd.f32 %v443, %v417
          %v445 = vadd.f32 %v444, %v418
          %v446 = vadd.f32 %v445, %v419
          %v447 = vadd.f32 %v446, %v420
          %v448 = vadd.f32 %v447, %v421
          %v449 = vrot.slane %v448, 4
          %v450 = vadd.f32 %v448, %v449
          %v451 = vrot.slane %v450, 2
          %v452 = vadd.f32 %v450, %v451
          %v453 = vrot.slane %v452, 1
          %v454 = vadd.f32 %v452, %v453
          %v455 = vmul.f32 %v414, %v414
          %v456 = vmul.f32 %v415, %v415
          %v457 = vmul.f32 %v416, %v416
          %v458 = vmul.f32 %v417, %v417
          %v459 = vmul.f32 %v418, %v418
          %v460 = vmul.f32 %v419, %v419
          %v461 = vmul.f32 %v420, %v420
          %v462 = vmul.f32 %v421, %v421
          %v463 = vadd.f32 %v455, %v456
          %v464 = vadd.f32 %v463, %v457
          %v465 = vadd.f32 %v464, %v458
          %v466 = vadd.f32 %v465, %v459
          %v467 = vadd.f32 %v466, %v460
          %v468 = vadd.f32 %v467, %v461
          %v469 = vadd.f32 %v468, %v462
          %v470 = vrot.slane %v469, 4
          %v471 = vadd.f32 %v469, %v470
          %v472 = vrot.slane %v471, 2
          %v473 = vadd.f32 %v471, %v472
          %v474 = vrot.slane %v473, 1
          %v475 = vadd.f32 %v473, %v474
          %476 = vmatpush.msra.mxu0 %v437
          %477 = vmatpush.msra.mxu0 %v436
          %478 = vmatpush.msra.mxu0 %v435
          %479 = vmatpush.msra.mxu0 %v434
          %480 = vmatpush.msra.mxu0 %v433
          %481 = vmatpush.msra.mxu0 %v432
          %482 = vmatpush.msra.mxu0 %v431
          %483 = vmatpush.msra.mxu0 %v430
          %484 = vmatpush.msra.mxu0 %v429
          %485 = vmatpush.msra.mxu0 %v428
          %486 = vmatpush.msra.mxu0 %v427
          %487 = vmatpush.msra.mxu0 %v426
          %488 = vmatpush.msra.mxu0 %v425
          %489 = vmatpush.msra.mxu0 %v424
          %490 = vmatpush.msra.mxu0 %v423
          %491 = vmatpush.msra.mxu0 %v422
          %492 = vmatmul.f32.gmra.mxu0 %v454
          %v493 = vpop.f32.mrf.mxu0
          %v494 = vadd.f32 0.0, %v493
          %495 = vdwg.mxu0
          %v496 = vrcp.pop 256.0
          %v497 = vmul.f32 256.0, %v496
          %v498 = vsub.f32 1.0, %v497
          %v499 = vmul.f32 %v496, %v498
          %v500 = vadd.f32 %v496, %v499
          %vm501 = vweird.f32 %v496
          %v502 = vsel %vm501, %v496, %v500
          %v503 = vmul.f32 %v494, %v502
          %504 = vmatpush.msra.mxu0 %v437
          %505 = vmatpush.msra.mxu0 %v436
          %506 = vmatpush.msra.mxu0 %v435
          %507 = vmatpush.msra.mxu0 %v434
          %508 = vmatpush.msra.mxu0 %v433
          %509 = vmatpush.msra.mxu0 %v432
          %510 = vmatpush.msra.mxu0 %v431
          %511 = vmatpush.msra.mxu0 %v430
          %512 = vmatpush.msra.mxu0 %v429
          %513 = vmatpush.msra.mxu0 %v428
          %514 = vmatpush.msra.mxu0 %v427
          %515 = vmatpush.msra.mxu0 %v426
          %516 = vmatpush.msra.mxu0 %v425
          %517 = vmatpush.msra.mxu0 %v424
          %518 = vmatpush.msra.mxu0 %v423
          %519 = vmatpush.msra.mxu0 %v422
          %520 = vmatmul.f32.gmra.mxu0 %v475
          %v521 = vpop.f32.mrf.mxu0
          %v522 = vadd.f32 0.0, %v521
          %523 = vdwg.mxu0
          %v524 = vmul.f32 %v522, %v502
          %v525 = vmul.f32 %v503, %v503
          %v526 = vsub.f32 %v524, %v525
          %vm527 = vcmask 261120
          %v529 = vsel %vm527, %v503, 0
          %531 = vmatpush.msra.mxu0 0.0
          %532 = vmatpush.msra.mxu0 0.0
          %533 = vmatpush.msra.mxu0 0.0
          %534 = vmatpush.msra.mxu0 0.0
          %535 = vmatpush.msra.mxu0 0.0
          %536 = vmatpush.msra.mxu0 0.0
          %537 = vmatpush.msra.mxu0 0.0
          %538 = vmatpush.msra.mxu0 0.0
          %539 = vmatpush.msra.mxu0 0.0
          %540 = vmatpush.msra.mxu0 0.0
          %541 = vmatpush.msra.mxu0 0.0
          %542 = vmatpush.msra.mxu0 0.0
          %543 = vmatpush.msra.mxu0 %v441
          %544 = vmatpush.msra.mxu0 %v440
          %545 = vmatpush.msra.mxu0 %v439
          %546 = vmatpush.msra.mxu0 %v438
          %547 = vmatmul.f32.gmra.mxu0 %v529
          %v548 = vpop.f32.mrf.mxu0
          %v549 = vadd.f32 0.0, %v548
          %550 = vdwg.mxu0
          %v551 = vperm.slane %v549, 0
          %v552 = vsub.f32 %v414, %v551
          %v553 = vsub.f32 %v415, %v551
          %v554 = vsub.f32 %v416, %v551
          %v555 = vsub.f32 %v417, %v551
          %v556 = vsub.f32 %v418, %v551
          %v557 = vsub.f32 %v419, %v551
          %v558 = vsub.f32 %v420, %v551
          %v559 = vsub.f32 %v421, %v551
          %v561 = vsel %vm527, %v526, 0
          %563 = vmatpush.msra.mxu0 0.0
          %564 = vmatpush.msra.mxu0 0.0
          %565 = vmatpush.msra.mxu0 0.0
          %566 = vmatpush.msra.mxu0 0.0
          %567 = vmatpush.msra.mxu0 0.0
          %568 = vmatpush.msra.mxu0 0.0
          %569 = vmatpush.msra.mxu0 0.0
          %570 = vmatpush.msra.mxu0 0.0
          %571 = vmatpush.msra.mxu0 0.0
          %572 = vmatpush.msra.mxu0 0.0
          %573 = vmatpush.msra.mxu0 0.0
          %574 = vmatpush.msra.mxu0 0.0
          %575 = vmatpush.msra.mxu0 %v441
          %576 = vmatpush.msra.mxu0 %v440
          %577 = vmatpush.msra.mxu0 %v439
          %578 = vmatpush.msra.mxu0 %v438
          %579 = vmatmul.f32.gmra.mxu0 %v561
          %v580 = vpop.f32.mrf.mxu0
          %v581 = vadd.f32 1e-06, %v580
          %582 = vdwg.mxu0
          %v583 = vrsqrt.pop %v581
          %v584 = vmul.f32 %v583, %v581
          %v585 = vmul.f32 %v584, %v583
          %v586 = vmul.f32 0.5, %v585
          %v587 = vsub.f32 1.5, %v586
          %v588 = vmul.f32 %v583, %v587
          %vm589 = vweird.f32 %v581
          %vm590 = vweird.f32 %v583
          %vm591 = vmor %vm589, %vm590
          %v592 = vsel %vm591, %v583, %v588
          %v593 = vperm.slane %v592, 0
          %v594 = vmul.f32 %v552, %v593
          %v595 = vmul.f32 %v553, %v593
          %v596 = vmul.f32 %v554, %v593
          %v597 = vmul.f32 %v555, %v593
          %v598 = vmul.f32 %v556, %v593
          %v599 = vmul.f32 %v557, %v593
          %v600 = vmul.f32 %v558, %v593
          %v601 = vmul.f32 %v559, %v593
          %v602 = vld [vmem:[#allocation5] sm:$0x1]
          %v604 = vperm.slane %v602, 0
          %v606 = vmul.f32 %v594, %v604
          %v607 = vmul.f32 %v595, %v604
          %v608 = vmul.f32 %v596, %v604
          %v609 = vmul.f32 %v597, %v604
          %v610 = vmul.f32 %v598, %v604
          %v611 = vmul.f32 %v599, %v604
          %v612 = vmul.f32 %v600, %v604
          %v613 = vmul.f32 %v601, %v604
          %v614 = vld [vmem:[#allocation8] sm:$0x1]
          %v616 = vperm.slane %v614, 0
          %v618 = vadd.f32 %v606, %v616
          %v619 = vadd.f32 %v607, %v616
          %v620 = vadd.f32 %v608, %v616
          %v621 = vadd.f32 %v609, %v616
          %v622 = vadd.f32 %v610, %v616
          %v623 = vadd.f32 %v611, %v616
          %v624 = vadd.f32 %v612, %v616
          %v625 = vadd.f32 %v613, %v616
          %v626 = vpack.c.bf16 %v619, %v618
          %v627 = vpack.c.bf16 %v621, %v620
          %v628 = vpack.c.bf16 %v623, %v622
          %v629 = vpack.c.bf16 %v625, %v624
          %v630 = vld [vmem:[#allocation10] sm:$0xff]
          %v631 = vld [vmem:[#allocation10 + $0x8] sm:$0xf]
          %v632 = vld [vmem:[#allocation10 + $0xc] sm:$0xff]
          %v633 = vld [vmem:[#allocation10 + $0x14] sm:$0xf]
          %v634 = vld [vmem:[#allocation10 + $0x18] sm:$0xff]
          %v635 = vld [vmem:[#allocation10 + $0x20] sm:$0xf]
          %v636 = vld [vmem:[#allocation10 + $0x24] sm:$0xff]
          %v637 = vld [vmem:[#allocation10 + $0x2c] sm:$0xf]
          %v638 = vld [vmem:[#allocation10 + $0x30] sm:$0xff]
          %v639 = vld [vmem:[#allocation10 + $0x38] sm:$0xf]
          %v640 = vld [vmem:[#allocation10 + $0x3c] sm:$0xff]
          %v641 = vld [vmem:[#allocation10 + $0x44] sm:$0xf]
          %v642 = vld [vmem:[#allocation10 + $0x48] sm:$0xff]
          %v643 = vld [vmem:[#allocation10 + $0x50] sm:$0xf]
          %v644 = vld [vmem:[#allocation10 + $0x54] sm:$0xff]
          %v645 = vld [vmem:[#allocation10 + $0x5c] sm:$0xf]
          %v646 = vld [vmem:[#allocation10 + $0x60] sm:$0xff]
          %v647 = vld [vmem:[#allocation10 + $0x68] sm:$0xf]
          %v648 = vld [vmem:[#allocation10 + $0x6c] sm:$0xff]
          %v649 = vld [vmem:[#allocation10 + $0x74] sm:$0xf]
          %v650 = vld [vmem:[#allocation10 + $0x78] sm:$0xff]
          %v651 = vld [vmem:[#allocation10 + $0x80] sm:$0xf]
          %v652 = vld [vmem:[#allocation10 + $0x84] sm:$0xff]
          %v653 = vld [vmem:[#allocation10 + $0x8c] sm:$0xf]
          %v654 = vld [vmem:[#allocation10 + $0x90] sm:$0xff]
          %v655 = vld [vmem:[#allocation10 + $0x98] sm:$0xf]
          %v656 = vld [vmem:[#allocation10 + $0x9c] sm:$0xff]
          %v657 = vld [vmem:[#allocation10 + $0xa4] sm:$0xf]
          %v658 = vld [vmem:[#allocation10 + $0xa8] sm:$0xff]
          %v659 = vld [vmem:[#allocation10 + $0xb0] sm:$0xf]
          %v660 = vld [vmem:[#allocation10 + $0xb4] sm:$0xff]
          %v661 = vld [vmem:[#allocation10 + $0xbc] sm:$0xf]
          %v662 = vld [vmem:[%s6] sm:$0x7]
          %v664 = vperm.slane %v662, 0
          %v665 = vperm.slane %v662, 1
          %v666 = vperm.slane %v662, 2
          %v702 = vunpack.c.l.b16 %v630
          %v703 = vunpack.c.h.b16 %v630
          %v704 = vunpack.c.l.b16 %v631
          %v705 = vunpack.c.l.b16 %v632
          %v706 = vunpack.c.h.b16 %v632
          %v707 = vunpack.c.l.b16 %v633
          %v708 = vunpack.c.l.b16 %v634
          %v709 = vunpack.c.h.b16 %v634
          %v710 = vunpack.c.l.b16 %v635
          %v711 = vunpack.c.l.b16 %v636
          %v712 = vunpack.c.h.b16 %v636
          %v713 = vunpack.c.l.b16 %v637
          %v714 = vunpack.c.l.b16 %v638
          %v715 = vunpack.c.h.b16 %v638
          %v716 = vunpack.c.l.b16 %v639
          %v717 = vunpack.c.l.b16 %v640
          %v718 = vunpack.c.h.b16 %v640
          %v719 = vunpack.c.l.b16 %v641
          %v720 = vunpack.c.l.b16 %v642
          %v721 = vunpack.c.h.b16 %v642
          %v722 = vunpack.c.l.b16 %v643
          %v723 = vunpack.c.l.b16 %v644
          %v724 = vunpack.c.h.b16 %v644
          %v725 = vunpack.c.l.b16 %v645
          %v726 = vunpack.c.l.b16 %v646
          %v727 = vunpack.c.h.b16 %v646
          %v728 = vunpack.c.l.b16 %v647
          %v729 = vunpack.c.l.b16 %v648
          %v730 = vunpack.c.h.b16 %v648
          %v731 = vunpack.c.l.b16 %v649
          %v732 = vunpack.c.l.b16 %v650
          %v733 = vunpack.c.h.b16 %v650
          %v734 = vunpack.c.l.b16 %v651
          %v735 = vunpack.c.l.b16 %v652
          %v736 = vunpack.c.h.b16 %v652
          %v737 = vunpack.c.l.b16 %v653
          %v738 = vunpack.c.l.b16 %v654
          %v739 = vunpack.c.h.b16 %v654
          %v740 = vunpack.c.l.b16 %v655
          %v741 = vunpack.c.l.b16 %v656
          %v742 = vunpack.c.h.b16 %v656
          %v743 = vunpack.c.l.b16 %v657
          %v744 = vunpack.c.l.b16 %v658
          %v745 = vunpack.c.h.b16 %v658
          %v746 = vunpack.c.l.b16 %v659
          %v747 = vunpack.c.l.b16 %v660
          %v748 = vunpack.c.h.b16 %v660
          %v749 = vunpack.c.l.b16 %v661
          %v750 = vpack.c.b16 %v705, %v702
          %v751 = vpack.c.b16 %v706, %v703
          %v752 = vpack.c.b16 %v707, %v704
          %v753 = vpack.c.b16 %v711, %v708
          %v754 = vpack.c.b16 %v712, %v709
          %v755 = vpack.c.b16 %v713, %v710
          %v756 = vpack.c.b16 %v717, %v714
          %v757 = vpack.c.b16 %v718, %v715
          %v758 = vpack.c.b16 %v719, %v716
          %v759 = vpack.c.b16 %v723, %v720
          %v760 = vpack.c.b16 %v724, %v721
          %v761 = vpack.c.b16 %v725, %v722
          %v762 = vpack.c.b16 %v729, %v726
          %v763 = vpack.c.b16 %v730, %v727
          %v764 = vpack.c.b16 %v731, %v728
          %v765 = vpack.c.b16 %v735, %v732
          %v766 = vpack.c.b16 %v736, %v733
          %v767 = vpack.c.b16 %v737, %v734
          %v768 = vpack.c.b16 %v741, %v738
          %v769 = vpack.c.b16 %v742, %v739
          %v770 = vpack.c.b16 %v743, %v740
          %v771 = vpack.c.b16 %v747, %v744
          %v772 = vpack.c.b16 %v748, %v745
          %v773 = vpack.c.b16 %v749, %v746
          %798 = vmatpush.bf16.msra.mxu0 %v771
          %799 = vmatpush.bf16.msra.mxu0 %v768
          %800 = vmatpush.bf16.msra.mxu0 %v765
          %801 = vmatpush.bf16.msra.mxu0 %v762
          %802 = vmatpush.bf16.msra.mxu0 %v759
          %803 = vmatpush.bf16.msra.mxu0 %v756
          %804 = vmatpush.bf16.msra.mxu0 %v753
          %805 = vmatpush.bf16.msra.mxu0 %v750
          %806 = vmatmul.bf16.gmra.mxu0 %v626
          %v807 = vpop.f32.mrf.mxu0
          %v808 = vadd.f32 %v664, %v807
          %v809 = vpop.f32.mrf.mxu0
          %v810 = vadd.f32 %v664, %v809
          %811 = vmatmul.bf16.gmra.mxu0 %v627
          %v812 = vpop.f32.mrf.mxu0
          %v813 = vadd.f32 %v664, %v812
          %v814 = vpop.f32.mrf.mxu0
          %v815 = vadd.f32 %v664, %v814
          %816 = vmatmul.bf16.gmra.mxu0 %v628
          %v817 = vpop.f32.mrf.mxu0
          %v818 = vadd.f32 %v664, %v817
          %v819 = vpop.f32.mrf.mxu0
          %v820 = vadd.f32 %v664, %v819
          %821 = vmatmul.bf16.gmra.mxu0 %v629
          %v822 = vpop.f32.mrf.mxu0
          %v823 = vadd.f32 %v664, %v822
          %v824 = vpop.f32.mrf.mxu0
          %v825 = vadd.f32 %v664, %v824
          %826 = vdwg.mxu0
          %827 = vmatpush.bf16.msra.mxu0 %v772
          %828 = vmatpush.bf16.msra.mxu0 %v769
          %829 = vmatpush.bf16.msra.mxu0 %v766
          %830 = vmatpush.bf16.msra.mxu0 %v763
          %831 = vmatpush.bf16.msra.mxu0 %v760
          %832 = vmatpush.bf16.msra.mxu0 %v757
          %833 = vmatpush.bf16.msra.mxu0 %v754
          %834 = vmatpush.bf16.msra.mxu0 %v751
          %835 = vmatmul.bf16.gmra.mxu0 %v626
          %v836 = vpop.f32.mrf.mxu0
          %v837 = vadd.f32 %v665, %v836
          %v838 = vpop.f32.mrf.mxu0
          %v839 = vadd.f32 %v665, %v838
          %840 = vmatmul.bf16.gmra.mxu0 %v627
          %v841 = vpop.f32.mrf.mxu0
          %v842 = vadd.f32 %v665, %v841
          %v843 = vpop.f32.mrf.mxu0
          %v844 = vadd.f32 %v665, %v843
          %845 = vmatmul.bf16.gmra.mxu0 %v628
          %v846 = vpop.f32.mrf.mxu0
          %v847 = vadd.f32 %v665, %v846
          %v848 = vpop.f32.mrf.mxu0
          %v849 = vadd.f32 %v665, %v848
          %850 = vmatmul.bf16.gmra.mxu0 %v629
          %v851 = vpop.f32.mrf.mxu0
          %v852 = vadd.f32 %v665, %v851
          %v853 = vpop.f32.mrf.mxu0
          %v854 = vadd.f32 %v665, %v853
          %855 = vdwg.mxu0
          %856 = vmatpush.bf16.msra.mxu0 %v773
          %857 = vmatpush.bf16.msra.mxu0 %v770
          %858 = vmatpush.bf16.msra.mxu0 %v767
          %859 = vmatpush.bf16.msra.mxu0 %v764
          %860 = vmatpush.bf16.msra.mxu0 %v761
          %861 = vmatpush.bf16.msra.mxu0 %v758
          %862 = vmatpush.bf16.msra.mxu0 %v755
          %863 = vmatpush.bf16.msra.mxu0 %v752
          %864 = vmatmul.bf16.gmra.mxu0 %v626
          %v865 = vpop.f32.mrf.mxu0
          %v866 = vadd.f32 %v666, %v865
          %v867 = vpop.f32.mrf.mxu0
          %v868 = vadd.f32 %v666, %v867
          %869 = vmatmul.bf16.gmra.mxu0 %v627
          %v870 = vpop.f32.mrf.mxu0
          %v871 = vadd.f32 %v666, %v870
          %v872 = vpop.f32.mrf.mxu0
          %v873 = vadd.f32 %v666, %v872
          %874 = vmatmul.bf16.gmra.mxu0 %v628
          %v875 = vpop.f32.mrf.mxu0
          %v876 = vadd.f32 %v666, %v875
          %v877 = vpop.f32.mrf.mxu0
          %v878 = vadd.f32 %v666, %v877
          %879 = vmatmul.bf16.gmra.mxu0 %v629
          %v880 = vpop.f32.mrf.mxu0
          %v881 = vadd.f32 %v666, %v880
          %v882 = vpop.f32.mrf.mxu0
          %v883 = vadd.f32 %v666, %v882
          %884 = vdwg.mxu0
          %v885 = vpack.c.bf16 %v808, %v808
          %v886 = vpack.c.bf16 %v810, %v810
          %v887 = vpack.c.bf16 %v813, %v813
          %v888 = vpack.c.bf16 %v815, %v815
          %v889 = vpack.c.bf16 %v818, %v818
          %v890 = vpack.c.bf16 %v820, %v820
          %v891 = vpack.c.bf16 %v823, %v823
          %v892 = vpack.c.bf16 %v825, %v825
          %893 = vst [vmem:[#allocation2] sm:$0xf] %v885
          %894 = vst [vmem:[#allocation2 + $0x4] sm:$0xf] %v886
          %895 = vst [vmem:[#allocation2 + $0x8] sm:$0xf] %v887
          %896 = vst [vmem:[#allocation2 + $0xc] sm:$0xf] %v888
          %897 = vst [vmem:[#allocation2 + $0x10] sm:$0xf] %v889
          %898 = vst [vmem:[#allocation2 + $0x14] sm:$0xf] %v890
          %899 = vst [vmem:[#allocation2 + $0x18] sm:$0xf] %v891
          %900 = vst [vmem:[#allocation2 + $0x1c] sm:$0xf] %v892
          %v901 = vpack.c.bf16 %v837, %v837
          %v902 = vpack.c.bf16 %v839, %v839
          %v903 = vpack.c.bf16 %v842, %v842
          %v904 = vpack.c.bf16 %v844, %v844
          %v905 = vpack.c.bf16 %v847, %v847
          %v906 = vpack.c.bf16 %v849, %v849
          %v907 = vpack.c.bf16 %v852, %v852
          %v908 = vpack.c.bf16 %v854, %v854
          %909 = vst [vmem:[#allocation3] sm:$0xf] %v901
          %910 = vst [vmem:[#allocation3 + $0x4] sm:$0xf] %v902
          %911 = vst [vmem:[#allocation3 + $0x8] sm:$0xf] %v903
          %912 = vst [vmem:[#allocation3 + $0xc] sm:$0xf] %v904
          %913 = vst [vmem:[#allocation3 + $0x10] sm:$0xf] %v905
          %914 = vst [vmem:[#allocation3 + $0x14] sm:$0xf] %v906
          %915 = vst [vmem:[#allocation3 + $0x18] sm:$0xf] %v907
          %916 = vst [vmem:[#allocation3 + $0x1c] sm:$0xf] %v908
          %v917 = vpack.c.bf16 %v866, %v866
          %v918 = vpack.c.bf16 %v868, %v868
          %v919 = vpack.c.bf16 %v871, %v871
          %v920 = vpack.c.bf16 %v873, %v873
          %v921 = vpack.c.bf16 %v876, %v876
          %v922 = vpack.c.bf16 %v878, %v878
          %v923 = vpack.c.bf16 %v881, %v881
          %v924 = vpack.c.bf16 %v883, %v883
          %925 = vst [vmem:[#allocation4] sm:$0xf] %v917
          %926 = vst [vmem:[#allocation4 + $0x4] sm:$0xf] %v918
          %927 = vst [vmem:[#allocation4 + $0x8] sm:$0xf] %v919
          %928 = vst [vmem:[#allocation4 + $0xc] sm:$0xf] %v920
          %929 = vst [vmem:[#allocation4 + $0x10] sm:$0xf] %v921
          %930 = vst [vmem:[#allocation4 + $0x14] sm:$0xf] %v922
          %931 = vst [vmem:[#allocation4 + $0x18] sm:$0xf] %v923
          %932 = vst [vmem:[#allocation4 + $0x1c] sm:$0xf] %v924
        $region76: #{tpu_custom_call.1} parent=55 // pred_fallthru
          _
        %s933 = smul.u32 %s31, 64
        %s934 = sshra.s32 %s933, 3
        %s935 = sand.u32 %s933, 7
        %s936 = smul.addr %s934, 4
        %s937 = scalar_lea.vmem [#allocation2], %s936
        %v938 = vld [vmem:[%s937] sm:$0xf]
        %v939 = vld [vmem:[%s937 + $0x4] sm:$0xf]
        %v940 = vld [vmem:[%s937 + $0x8] sm:$0xf]
        %v941 = vld [vmem:[%s937 + $0xc] sm:$0xf]
        %v942 = vld [vmem:[%s937 + $0x10] sm:$0xf]
        %v943 = vld [vmem:[%s937 + $0x14] sm:$0xf]
        %v944 = vld [vmem:[%s937 + $0x18] sm:$0xf]
        %v945 = vld [vmem:[%s937 + $0x1c] sm:$0xf]
        %v946 = vld [vmem:[#allocation3] sm:$0xf]
        %v947 = vld [vmem:[#allocation3 + $0x4] sm:$0xf]
        %v948 = vld [vmem:[#allocation3 + $0x8] sm:$0xf]
        %v949 = vld [vmem:[#allocation3 + $0xc] sm:$0xf]
        %v950 = vld [vmem:[#allocation3 + $0x10] sm:$0xf]
        %v951 = vld [vmem:[#allocation3 + $0x14] sm:$0xf]
        %v952 = vld [vmem:[#allocation3 + $0x18] sm:$0xf]
        %v953 = vld [vmem:[#allocation3 + $0x1c] sm:$0xf]
        %v962 = vunpack.c.l.b16 %v938
        %v963 = vunpack.c.l.b16 %v939
        %v964 = vunpack.c.l.b16 %v940
        %v965 = vunpack.c.l.b16 %v941
        %v966 = vunpack.c.l.b16 %v942
        %v967 = vunpack.c.l.b16 %v943
        %v968 = vunpack.c.l.b16 %v944
        %v969 = vunpack.c.l.b16 %v945
        %v970 = vpack.c.b16 %v963, %v962
        %v971 = vpack.c.b16 %v965, %v964
        %v972 = vpack.c.b16 %v967, %v966
        %v973 = vpack.c.b16 %v969, %v968
        %v986 = vunpack.c.l.b16 %v946
        %v987 = vunpack.c.l.b16 %v947
        %v988 = vunpack.c.l.b16 %v948
        %v989 = vunpack.c.l.b16 %v949
        %v990 = vunpack.c.l.b16 %v950
        %v991 = vunpack.c.l.b16 %v951
        %v992 = vunpack.c.l.b16 %v952
        %v993 = vunpack.c.l.b16 %v953
        %v994 = vpack.c.b16 %v987, %v986
        %v995 = vpack.c.b16 %v989, %v988
        %v996 = vpack.c.b16 %v991, %v990
        %v997 = vpack.c.b16 %v993, %v992
        %1002 = vmatpush.bf16.xpose.msra.mxu0 0
        %1003 = vmatpush.bf16.xpose.msra.mxu0 0
        %1004 = vmatpush.bf16.xpose.msra.mxu0 0
        %1005 = vmatpush.bf16.xpose.msra.mxu0 0
        %1006 = vmatpush.bf16.xpose.msra.mxu0 %v997
        %1007 = vmatpush.bf16.xpose.msra.mxu0 %v996
        %1008 = vmatpush.bf16.xpose.msra.mxu0 %v995
        %1009 = vmatpush.bf16.xpose.msra.mxu0 %v994
        %1010 = vmatmul.bf16.gmra.mxu0 %v970
        %v1011 = vpop.f32.mrf.mxu0
        %v1012 = vadd.f32 0.0, %v1011
        %v1013 = vpop.f32.mrf.mxu0
        %v1014 = vadd.f32 0.0, %v1013
        %1015 = vmatmul.bf16.gmra.mxu0 %v971
        %v1016 = vpop.f32.mrf.mxu0
        %v1017 = vadd.f32 0.0, %v1016
        %v1018 = vpop.f32.mrf.mxu0
        %v1019 = vadd.f32 0.0, %v1018
        %1020 = vmatmul.bf16.gmra.mxu0 %v972
        %v1021 = vpop.f32.mrf.mxu0
        %v1022 = vadd.f32 0.0, %v1021
        %v1023 = vpop.f32.mrf.mxu0
        %v1024 = vadd.f32 0.0, %v1023
        %1025 = vmatmul.bf16.gmra.mxu0 %v973
        %v1026 = vpop.f32.mrf.mxu0
        %v1027 = vadd.f32 0.0, %v1026
        %v1028 = vpop.f32.mrf.mxu0
        %v1029 = vadd.f32 0.0, %v1028
        %1030 = vdwg.mxu0
        %vm1031 = vcmask 523264
        %v1032 = vsel %vm1031, %v1012, -inf
        %1033 = vmax.xlane.f32.xlu0 %v1032
        %v1034 = vpop.xlane.xlu0 %1033
        %v1035 = vsel %vm1031, %v1014, -inf
        %1036 = vmax.xlane.f32.xlu0 %v1035
        %v1037 = vpop.xlane.xlu0 %1036
        %v1038 = vsel %vm1031, %v1017, -inf
        %1039 = vmax.xlane.f32.xlu0 %v1038
        %v1040 = vpop.xlane.xlu0 %1039
        %v1041 = vsel %vm1031, %v1019, -inf
        %1042 = vmax.xlane.f32.xlu0 %v1041
        %v1043 = vpop.xlane.xlu0 %1042
        %v1044 = vsel %vm1031, %v1022, -inf
        %1045 = vmax.xlane.f32.xlu0 %v1044
        %v1046 = vpop.xlane.xlu0 %1045
        %v1047 = vsel %vm1031, %v1024, -inf
        %1048 = vmax.xlane.f32.xlu0 %v1047
        %v1049 = vpop.xlane.xlu0 %1048
        %v1050 = vsel %vm1031, %v1027, -inf
        %1051 = vmax.xlane.f32.xlu0 %v1050
        %v1052 = vpop.xlane.xlu0 %1051
        %v1053 = vsel %vm1031, %v1029, -inf
        %1054 = vmax.xlane.f32.xlu0 %v1053
        %v1055 = vpop.xlane.xlu0 %1054
        %v1056 = vsub.f32 %v1012, %v1034
        %v1057 = vsub.f32 %v1014, %v1037
        %v1058 = vsub.f32 %v1017, %v1040
        %v1059 = vsub.f32 %v1019, %v1043
        %v1060 = vsub.f32 %v1022, %v1046
        %v1061 = vsub.f32 %v1024, %v1049
        %v1062 = vsub.f32 %v1027, %v1052
        %v1063 = vsub.f32 %v1029, %v1055
        %v1064 = vpack.c.bf16 %v1057, %v1056
        %v1065 = vpack.c.bf16 %v1059, %v1058
        %v1066 = vpack.c.bf16 %v1061, %v1060
        %v1067 = vpack.c.bf16 %v1063, %v1062
        %v1068 = vunpack.c.l.bf16 %v1064
        %v1069 = vunpack.c.h.bf16 %v1064
        %v1070 = vunpack.c.l.bf16 %v1065
        %v1071 = vunpack.c.h.bf16 %v1065
        %v1072 = vunpack.c.l.bf16 %v1066
        %v1073 = vunpack.c.h.bf16 %v1066
        %v1074 = vunpack.c.l.bf16 %v1067
        %v1075 = vunpack.c.h.bf16 %v1067
        %v1076 = vmul.f32 %v1068, 1.442695
        %v1077 = vpow.pop %v1076
        %v1078 = vmul.f32 %v1069, 1.442695
        %v1079 = vpow.pop %v1078
        %v1080 = vmul.f32 %v1070, 1.442695
        %v1081 = vpow.pop %v1080
        %v1082 = vmul.f32 %v1071, 1.442695
        %v1083 = vpow.pop %v1082
        %v1084 = vmul.f32 %v1072, 1.442695
        %v1085 = vpow.pop %v1084
        %v1086 = vmul.f32 %v1073, 1.442695
        %v1087 = vpow.pop %v1086
        %v1088 = vmul.f32 %v1074, 1.442695
        %v1089 = vpow.pop %v1088
        %v1090 = vmul.f32 %v1075, 1.442695
        %v1091 = vpow.pop %v1090
        %v1092 = vpack.c.bf16 %v1079, %v1077
        %v1093 = vpack.c.bf16 %v1083, %v1081
        %v1094 = vpack.c.bf16 %v1087, %v1085
        %v1095 = vpack.c.bf16 %v1091, %v1089
        %v1096 = vunpack.c.l.bf16 %v1092
        %v1097 = vunpack.c.h.bf16 %v1092
        %v1098 = vunpack.c.l.bf16 %v1093
        %v1099 = vunpack.c.h.bf16 %v1093
        %v1100 = vunpack.c.l.bf16 %v1094
        %v1101 = vunpack.c.h.bf16 %v1094
        %v1102 = vunpack.c.l.bf16 %v1095
        %v1103 = vunpack.c.h.bf16 %v1095
        %v1104 = vsel %vm1031, %v1096, 0.0
        %1105 = vadd.xlane.f32.xlu0 %v1104
        %v1106 = vpop.xlane.xlu0 %1105
        %v1107 = vsel %vm1031, %v1097, 0.0
        %1108 = vadd.xlane.f32.xlu0 %v1107
        %v1109 = vpop.xlane.xlu0 %1108
        %v1110 = vsel %vm1031, %v1098, 0.0
        %1111 = vadd.xlane.f32.xlu0 %v1110
        %v1112 = vpop.xlane.xlu0 %1111
        %v1113 = vsel %vm1031, %v1099, 0.0
        %1114 = vadd.xlane.f32.xlu0 %v1113
        %v1115 = vpop.xlane.xlu0 %1114
        %v1116 = vsel %vm1031, %v1100, 0.0
        %1117 = vadd.xlane.f32.xlu0 %v1116
        %v1118 = vpop.xlane.xlu0 %1117
        %v1119 = vsel %vm1031, %v1101, 0.0
        %1120 = vadd.xlane.f32.xlu0 %v1119
        %v1121 = vpop.xlane.xlu0 %1120
        %v1122 = vsel %vm1031, %v1102, 0.0
        %1123 = vadd.xlane.f32.xlu0 %v1122
        %v1124 = vpop.xlane.xlu0 %1123
        %v1125 = vsel %vm1031, %v1103, 0.0
        %1126 = vadd.xlane.f32.xlu0 %v1125
        %v1127 = vpop.xlane.xlu0 %1126
        %v1128 = vld [vmem:[#allocation4] sm:$0xf]
        %v1129 = vld [vmem:[#allocation4 + $0x4] sm:$0xf]
        %v1130 = vld [vmem:[#allocation4 + $0x8] sm:$0xf]
        %v1131 = vld [vmem:[#allocation4 + $0xc] sm:$0xf]
        %v1132 = vld [vmem:[#allocation4 + $0x10] sm:$0xf]
        %v1133 = vld [vmem:[#allocation4 + $0x14] sm:$0xf]
        %v1134 = vld [vmem:[#allocation4 + $0x18] sm:$0xf]
        %v1135 = vld [vmem:[#allocation4 + $0x1c] sm:$0xf]
        %v1144 = vunpack.c.l.b16 %v1128
        %v1145 = vunpack.c.l.b16 %v1129
        %v1146 = vunpack.c.l.b16 %v1130
        %v1147 = vunpack.c.l.b16 %v1131
        %v1148 = vunpack.c.l.b16 %v1132
        %v1149 = vunpack.c.l.b16 %v1133
        %v1150 = vunpack.c.l.b16 %v1134
        %v1151 = vunpack.c.l.b16 %v1135
        %v1152 = vpack.c.b16 %v1145, %v1144
        %v1153 = vpack.c.b16 %v1147, %v1146
        %v1154 = vpack.c.b16 %v1149, %v1148
        %v1155 = vpack.c.b16 %v1151, %v1150
        %v1161 = vsel %vm1031, %v1092, 0
        %v1164 = vsel %vm1031, %v1093, 0
        %v1167 = vsel %vm1031, %v1094, 0
        %v1170 = vsel %vm1031, %v1095, 0
        %1172 = vmatpush.bf16.msra.mxu0 0
        %1173 = vmatpush.bf16.msra.mxu0 0
        %1174 = vmatpush.bf16.msra.mxu0 0
        %1175 = vmatpush.bf16.msra.mxu0 0
        %1176 = vmatpush.bf16.msra.mxu0 %v1155
        %1177 = vmatpush.bf16.msra.mxu0 %v1154
        %1178 = vmatpush.bf16.msra.mxu0 %v1153
        %1179 = vmatpush.bf16.msra.mxu0 %v1152
        %1180 = vmatmul.bf16.gmra.mxu0 %v1161
        %v1181 = vpop.f32.mrf.mxu0
        %v1182 = vadd.f32 0.0, %v1181
        %v1183 = vpop.f32.mrf.mxu0
        %v1184 = vadd.f32 0.0, %v1183
        %1185 = vmatmul.bf16.gmra.mxu0 %v1164
        %v1186 = vpop.f32.mrf.mxu0
        %v1187 = vadd.f32 0.0, %v1186
        %v1188 = vpop.f32.mrf.mxu0
        %v1189 = vadd.f32 0.0, %v1188
        %1190 = vmatmul.bf16.gmra.mxu0 %v1167
        %v1191 = vpop.f32.mrf.mxu0
        %v1192 = vadd.f32 0.0, %v1191
        %v1193 = vpop.f32.mrf.mxu0
        %v1194 = vadd.f32 0.0, %v1193
        %1195 = vmatmul.bf16.gmra.mxu0 %v1170
        %v1196 = vpop.f32.mrf.mxu0
        %v1197 = vadd.f32 0.0, %v1196
        %v1198 = vpop.f32.mrf.mxu0
        %v1199 = vadd.f32 0.0, %v1198
        %1200 = vdwg.mxu0
        %v1201 = vrcp.pop %v1106
        %v1202 = vmul.f32 %v1106, %v1201
        %v1203 = vsub.f32 1.0, %v1202
        %v1204 = vmul.f32 %v1201, %v1203
        %v1205 = vadd.f32 %v1201, %v1204
        %vm1206 = vweird.f32 %v1106
        %vm1207 = vweird.f32 %v1201
        %vm1208 = vmor %vm1206, %vm1207
        %v1209 = vsel %vm1208, %v1201, %v1205
        %v1210 = vand.u32 2147483647, %v1106
        %vm1211 = vcmp.eq.f32.partialorder %v1210, 8.507059e+37
        %v1212 = vand.u32 %v1106, 2147483648
        %v1213 = vor.u32 1.1754944e-38, %v1212
        %v1214 = vsel %vm1211, %v1213, %v1209
        %v1215 = vrcp.pop %v1109
        %v1216 = vmul.f32 %v1109, %v1215
        %v1217 = vsub.f32 1.0, %v1216
        %v1218 = vmul.f32 %v1215, %v1217
        %v1219 = vadd.f32 %v1215, %v1218
        %vm1220 = vweird.f32 %v1109
        %vm1221 = vweird.f32 %v1215
        %vm1222 = vmor %vm1220, %vm1221
        %v1223 = vsel %vm1222, %v1215, %v1219
        %v1224 = vand.u32 2147483647, %v1109
        %vm1225 = vcmp.eq.f32.partialorder %v1224, 8.507059e+37
        %v1226 = vand.u32 %v1109, 2147483648
        %v1227 = vor.u32 1.1754944e-38, %v1226
        %v1228 = vsel %vm1225, %v1227, %v1223
        %v1229 = vrcp.pop %v1112
        %v1230 = vmul.f32 %v1112, %v1229
        %v1231 = vsub.f32 1.0, %v1230
        %v1232 = vmul.f32 %v1229, %v1231
        %v1233 = vadd.f32 %v1229, %v1232
        %vm1234 = vweird.f32 %v1112
        %vm1235 = vweird.f32 %v1229
        %vm1236 = vmor %vm1234, %vm1235
        %v1237 = vsel %vm1236, %v1229, %v1233
        %v1238 = vand.u32 2147483647, %v1112
        %vm1239 = vcmp.eq.f32.partialorder %v1238, 8.507059e+37
        %v1240 = vand.u32 %v1112, 2147483648
        %v1241 = vor.u32 1.1754944e-38, %v1240
        %v1242 = vsel %vm1239, %v1241, %v1237
        %v1243 = vrcp.pop %v1115
        %v1244 = vmul.f32 %v1115, %v1243
        %v1245 = vsub.f32 1.0, %v1244
        %v1246 = vmul.f32 %v1243, %v1245
        %v1247 = vadd.f32 %v1243, %v1246
        %vm1248 = vweird.f32 %v1115
        %vm1249 = vweird.f32 %v1243
        %vm1250 = vmor %vm1248, %vm1249
        %v1251 = vsel %vm1250, %v1243, %v1247
        %v1252 = vand.u32 2147483647, %v1115
        %vm1253 = vcmp.eq.f32.partialorder %v1252, 8.507059e+37
        %v1254 = vand.u32 %v1115, 2147483648
        %v1255 = vor.u32 1.1754944e-38, %v1254
        %v1256 = vsel %vm1253, %v1255, %v1251
        %v1257 = vrcp.pop %v1118
        %v1258 = vmul.f32 %v1118, %v1257
        %v1259 = vsub.f32 1.0, %v1258
        %v1260 = vmul.f32 %v1257, %v1259
        %v1261 = vadd.f32 %v1257, %v1260
        %vm1262 = vweird.f32 %v1118
        %vm1263 = vweird.f32 %v1257
        %vm1264 = vmor %vm1262, %vm1263
        %v1265 = vsel %vm1264, %v1257, %v1261
        %v1266 = vand.u32 2147483647, %v1118
        %vm1267 = vcmp.eq.f32.partialorder %v1266, 8.507059e+37
        %v1268 = vand.u32 %v1118, 2147483648
        %v1269 = vor.u32 1.1754944e-38, %v1268
        %v1270 = vsel %vm1267, %v1269, %v1265
        %v1271 = vrcp.pop %v1121
        %v1272 = vmul.f32 %v1121, %v1271
        %v1273 = vsub.f32 1.0, %v1272
        %v1274 = vmul.f32 %v1271, %v1273
        %v1275 = vadd.f32 %v1271, %v1274
        %vm1276 = vweird.f32 %v1121
        %vm1277 = vweird.f32 %v1271
        %vm1278 = vmor %vm1276, %vm1277
        %v1279 = vsel %vm1278, %v1271, %v1275
        %v1280 = vand.u32 2147483647, %v1121
        %vm1281 = vcmp.eq.f32.partialorder %v1280, 8.507059e+37
        %v1282 = vand.u32 %v1121, 2147483648
        %v1283 = vor.u32 1.1754944e-38, %v1282
        %v1284 = vsel %vm1281, %v1283, %v1279
        %v1285 = vrcp.pop %v1124
        %v1286 = vmul.f32 %v1124, %v1285
        %v1287 = vsub.f32 1.0, %v1286
        %v1288 = vmul.f32 %v1285, %v1287
        %v1289 = vadd.f32 %v1285, %v1288
        %vm1290 = vweird.f32 %v1124
        %vm1291 = vweird.f32 %v1285
        %vm1292 = vmor %vm1290, %vm1291
        %v1293 = vsel %vm1292, %v1285, %v1289
        %v1294 = vand.u32 2147483647, %v1124
        %vm1295 = vcmp.eq.f32.partialorder %v1294, 8.507059e+37
        %v1296 = vand.u32 %v1124, 2147483648
        %v1297 = vor.u32 1.1754944e-38, %v1296
        %v1298 = vsel %vm1295, %v1297, %v1293
        %v1299 = vrcp.pop %v1127
        %v1300 = vmul.f32 %v1127, %v1299
        %v1301 = vsub.f32 1.0, %v1300
        %v1302 = vmul.f32 %v1299, %v1301
        %v1303 = vadd.f32 %v1299, %v1302
        %vm1304 = vweird.f32 %v1127
        %vm1305 = vweird.f32 %v1299
        %vm1306 = vmor %vm1304, %vm1305
        %v1307 = vsel %vm1306, %v1299, %v1303
        %v1308 = vand.u32 2147483647, %v1127
        %vm1309 = vcmp.eq.f32.partialorder %v1308, 8.507059e+37
        %v1310 = vand.u32 %v1127, 2147483648
        %v1311 = vor.u32 1.1754944e-38, %v1310
        %v1312 = vsel %vm1309, %v1311, %v1307
        %v1313 = vmul.f32 %v1182, %v1214
        %v1314 = vmul.f32 %v1184, %v1228
        %v1315 = vmul.f32 %v1187, %v1242
        %v1316 = vmul.f32 %v1189, %v1256
        %v1317 = vmul.f32 %v1192, %v1270
        %v1318 = vmul.f32 %v1194, %v1284
        %v1319 = vmul.f32 %v1197, %v1298
        %v1320 = vmul.f32 %v1199, %v1312
        %v1321 = vpack.c.bf16 %v1314, %v1313
        %v1322 = vpack.c.bf16 %v1316, %v1315
        %v1323 = vpack.c.bf16 %v1318, %v1317
        %v1324 = vpack.c.bf16 %v1320, %v1319
        %v1325 = vld [vmem:[#allocation11] sm:$0xf]
        %v1326 = vld [vmem:[#allocation11 + $0x4] sm:$0xf]
        %v1327 = vld [vmem:[#allocation11 + $0x8] sm:$0xf]
        %v1328 = vld [vmem:[#allocation11 + $0xc] sm:$0xf]
        %v1329 = vld [vmem:[#allocation11 + $0x10] sm:$0xf]
        %v1330 = vld [vmem:[#allocation11 + $0x14] sm:$0xf]
        %v1331 = vld [vmem:[#allocation11 + $0x18] sm:$0xf]
        %v1332 = vld [vmem:[#allocation11 + $0x1c] sm:$0xf]
        %v1333 = vld [vmem:[#allocation11 + $0x20] sm:$0xf]
        %v1334 = vld [vmem:[#allocation11 + $0x24] sm:$0xf]
        %v1335 = vld [vmem:[#allocation11 + $0x28] sm:$0xf]
        %v1336 = vld [vmem:[#allocation11 + $0x2c] sm:$0xf]
        %v1337 = vld [vmem:[#allocation11 + $0x30] sm:$0xf]
        %v1338 = vld [vmem:[#allocation11 + $0x34] sm:$0xf]
        %v1339 = vld [vmem:[#allocation11 + $0x38] sm:$0xf]
        %v1340 = vld [vmem:[#allocation11 + $0x3c] sm:$0xf]
        %v1341 = vld [vmem:[%s8] sm:$0x1]
        %v1343 = vperm.slane %v1341, 0
        %v1361 = vunpack.c.l.b16 %v1325
        %v1362 = vunpack.c.l.b16 %v1326
        %v1363 = vunpack.c.l.b16 %v1327
        %v1364 = vunpack.c.l.b16 %v1328
        %v1365 = vunpack.c.l.b16 %v1329
        %v1366 = vunpack.c.l.b16 %v1330
        %v1367 = vunpack.c.l.b16 %v1331
        %v1368 = vunpack.c.l.b16 %v1332
        %v1369 = vunpack.c.l.b16 %v1333
        %v1370 = vunpack.c.l.b16 %v1334
        %v1371 = vunpack.c.l.b16 %v1335
        %v1372 = vunpack.c.l.b16 %v1336
        %v1373 = vunpack.c.l.b16 %v1337
        %v1374 = vunpack.c.l.b16 %v1338
        %v1375 = vunpack.c.l.b16 %v1339
        %v1376 = vunpack.c.l.b16 %v1340
        %v1377 = vpack.c.b16 %v1362, %v1361
        %v1378 = vpack.c.b16 %v1364, %v1363
        %v1379 = vpack.c.b16 %v1366, %v1365
        %v1380 = vpack.c.b16 %v1368, %v1367
        %v1381 = vpack.c.b16 %v1370, %v1369
        %v1382 = vpack.c.b16 %v1372, %v1371
        %v1383 = vpack.c.b16 %v1374, %v1373
        %v1384 = vpack.c.b16 %v1376, %v1375
        %1393 = vmatpush.bf16.msra.mxu0 %v1384
        %1394 = vmatpush.bf16.msra.mxu0 %v1383
        %1395 = vmatpush.bf16.msra.mxu0 %v1382
        %1396 = vmatpush.bf16.msra.mxu0 %v1381
        %1397 = vmatpush.bf16.msra.mxu0 %v1380
        %1398 = vmatpush.bf16.msra.mxu0 %v1379
        %1399 = vmatpush.bf16.msra.mxu0 %v1378
        %1400 = vmatpush.bf16.msra.mxu0 %v1377
        %1401 = vmatmul.bf16.gmra.mxu0 %v1321
        %v1402 = vpop.f32.mrf.mxu0
        %v1403 = vadd.f32 %v1343, %v1402
        %v1404 = vpop.f32.mrf.mxu0
        %v1405 = vadd.f32 %v1343, %v1404
        %1406 = vmatmul.bf16.gmra.mxu0 %v1322
        %v1407 = vpop.f32.mrf.mxu0
        %v1408 = vadd.f32 %v1343, %v1407
        %v1409 = vpop.f32.mrf.mxu0
        %v1410 = vadd.f32 %v1343, %v1409
        %1411 = vmatmul.bf16.gmra.mxu0 %v1323
        %v1412 = vpop.f32.mrf.mxu0
        %v1413 = vadd.f32 %v1343, %v1412
        %v1414 = vpop.f32.mrf.mxu0
        %v1415 = vadd.f32 %v1343, %v1414
        %1416 = vmatmul.bf16.gmra.mxu0 %v1324
        %v1417 = vpop.f32.mrf.mxu0
        %v1418 = vadd.f32 %v1343, %v1417
        %v1419 = vpop.f32.mrf.mxu0
        %v1420 = vadd.f32 %v1343, %v1419
        %1421 = vdwg.mxu0
        %s1422 = scalar_lea.vmem %s407, %s933
        %v1423 = vld [vmem:[%s1422] sm:$0xff]
        %v1424 = vld [vmem:[%s1422 + $0x8] sm:$0xff]
        %v1425 = vld [vmem:[%s1422 + $0x10] sm:$0xff]
        %v1426 = vld [vmem:[%s1422 + $0x18] sm:$0xff]
        %v1427 = vld [vmem:[%s1422 + $0x20] sm:$0xff]
        %v1428 = vld [vmem:[%s1422 + $0x28] sm:$0xff]
        %v1429 = vld [vmem:[%s1422 + $0x30] sm:$0xff]
        %v1430 = vld [vmem:[%s1422 + $0x38] sm:$0xff]
        %v1431 = vadd.f32 %v1423, %v1403
        %v1432 = vadd.f32 %v1424, %v1405
        %v1433 = vadd.f32 %v1425, %v1408
        %v1434 = vadd.f32 %v1426, %v1410
        %v1435 = vadd.f32 %v1427, %v1413
        %v1436 = vadd.f32 %v1428, %v1415
        %v1437 = vadd.f32 %v1429, %v1418
        %v1438 = vadd.f32 %v1430, %v1420
        %1439 = vst [vmem:[%s402] sm:$0xff] %v1431
        %1440 = vst [vmem:[%s402 + $0x8] sm:$0xff] %v1432
        %1441 = vst [vmem:[%s402 + $0x10] sm:$0xff] %v1433
        %1442 = vst [vmem:[%s402 + $0x18] sm:$0xff] %v1434
        %1443 = vst [vmem:[%s402 + $0x20] sm:$0xff] %v1435
        %1444 = vst [vmem:[%s402 + $0x28] sm:$0xff] %v1436
        %1445 = vst [vmem:[%s402 + $0x30] sm:$0xff] %v1437
        %1446 = vst [vmem:[%s402 + $0x38] sm:$0xff] %v1438
        %s1447 = sand.u32 %s242, 1
        %s1448 = scalar_lea.sflag [#allocation7], %s1447
        %s1449 = sand.u32 %s242, 1
        %s1450 = smul.addr %s1449, 64
        %s1451 = scalar_lea.vmem [#allocation13], %s1450
        // Predicated region
        $region77: #{tpu_custom_call.1} parent=55 // pred_check
          %p1452 = pneg %p252
        $region78: #{tpu_custom_call.1} parent=55 // pred_check_branch
          %1454 = sbr.rel (%p1452) target = $region80
        $region79: #{tpu_custom_call.1} parent=55 // pred_region
          %s1455 = smul.u32 8, %s31
          %1457 = vsyncadd %s1448, 0
          %s1458 = smul.addr %s30, 8
          %s1459 = sadd.s32 %s1455, %s1458
          %s1460 = smul.addr %s1459, 8
          %s1461 = scalar_lea.hbm %s9, %s1460
          %s1462 = sshll.u32 %s1451, 4
          %s1463 = int_to_ptr.vmem [resolvable:$true] %s1462
          %s1464 = sshll.u32 %s1461, 4
          %s1465 = int_to_ptr.hbm [resolvable:$true] %s1464
          %1470 = dma.vmem_to_hbm [thread:$0]  %s1463, 1024, %s1465, %s1448, 128, 128, 8
        $region80: #{tpu_custom_call.1} parent=55 // pred_fallthru
          _
      $region56: #{tpu_custom_call.1} parent=5 // pred_fallthru
        _
      %p1471 = scmp.le.s32.totalorder 2, %s21
      // Predicated region
      $region81: #{tpu_custom_call.1} parent=5 // pred_check
        %p1472 = pneg %p1471
      $region82: #{tpu_custom_call.1} parent=5 // pred_check_branch
        %1474 = sbr.rel (%p1472) target = $region84
      $region83: #{tpu_custom_call.1} parent=5 // pred_region
        %s1475 = ssub.s32 %s21, 2
        // Predicated region
        $region85: #{tpu_custom_call.1} parent=83 // pred_check
          %p1476 = pneg %p258
        $region86: #{tpu_custom_call.1} parent=83 // pred_check_branch
          %1478 = sbr.rel (%p1476) target = $region88
        $region87: #{tpu_custom_call.1} parent=83 // pred_region
          %s1479 = sand.u32 %s243, 1
          %s1480 = scalar_lea.sflag [#allocation7], %s1479
          %s1481 = sand.u32 %s243, 1
          %s1482 = smul.addr %s1481, 64
          %s1483 = scalar_lea.vmem [#allocation13], %s1482
          %1485 = dma.done %s1480, 1024
        $region88: #{tpu_custom_call.1} parent=83 // pred_fallthru
          _
      $region84: #{tpu_custom_call.1} parent=5 // pred_fallthru
        _
    $region6: #{tpu_custom_call.1} parent=1 // loop_footer
      %s25 = sadd.s32 1, %s21
    $region7: #{tpu_custom_call.1} parent=1 // loop_footer_branch
      %20 = sbr.rel target = $region3
    $region8: #{tpu_custom_call.1} parent=1 // loop_exit
      _
    %1486 = vsyncpa [#allocation6], 1
    %s1487 = scalar_lea.sflag [#allocation6], 1
    %1488 = vsyncpa %s1487, 1
    %1489 = vsyncpa [#allocation9], 1
    %1490 = vsyncpa [#allocation12], 1
    %1491 = vsyncpa [#allocation7], 1
    %s1492 = scalar_lea.sflag [#allocation7], 1
    %1493 = vsyncpa %s1492, 1

</llo_original>
